<compile_context>
chip_gen: v6e
topology: v6e:2x2x1
jax: 0.10.0
libtpu: 0.0.40
codegen_flags: <defaults>
</compile_context>

<pallas_src>
import jax
import jax.numpy as jnp
from jax.experimental import pallas as pl
from jax.experimental.pallas import tpu as pltpu

# hyperparameters from FL_Affect.py
HIDDEN_SIZE = 1
INPUT_FEATURES = 64
NUM_LAYERS = 1
OUTPUT_DIM = 2
SEQ_LEN = 8
CNN_FEAT = 512  # resnet18 feature dim (fc replaced by identity)


# ---------------------------- fused forward kernel --------------------------
def fused_forward_kernel(x_ref, wp_ref, bf_ref, wbig_ref, whh_ref, bias_ref,
                         wo_ref, bo_ref, pred_ref, snk_scr):
    i = pl.program_id(0)
    tn = x_ref.shape[0]          # batch tile
    n = snk_scr.shape[0]         # full batch
    single_tile = (tn == n)      # static

    # ---- stage 1 (every grid step): CNN stand-in + RNN input projection ----
    # TODO(synk): the reference uses a pretrained torchvision ResNet18 backbone
    # (fc stripped, 512-d features); stand-in is GAP + linear->512 (GAP folded
    # into W' in pack_params), preserving all downstream shapes/semantics.
    feat = jnp.dot(x_ref[...], wp_ref[...],
                   preferred_element_type=jnp.float32) + bf_ref[...]   # (tn,512)
    # w_big is W_ih^T tiled block-diagonally to (512, 8): the row-major flat
    # order of s_nk equals torch's input1.view(seq_len, -1, 64) flat-row order,
    # so no in-kernel reshape/relayout is ever needed.
    s_tile = jnp.dot(feat, wbig_ref[...],
                     preferred_element_type=jnp.float32)                # (tn, 8)
    if not single_tile:
        row0 = pl.multiple_of(i * tn, tn)
        snk_scr[pl.ds(row0, tn), :] = s_tile

    # ---- stage 2 (last grid step only): recurrence + Linear(8 -> 2) --------
    @pl.when(i == pl.num_programs(0) - 1)
    def _():
        whh = whh_ref[0]                              # SMEM scalars, read once
        b = bias_ref[0]
        s_all = (s_tile if single_tile else snk_scr[...]) + b   # bias fused once

        # h_t = tanh(x_t @ W_ih^T + h_{t-1} @ W_hh^T + b); torch-view timestep
        # t consumes flat rows [t*n, (t+1)*n) of s_all — a contiguous rectangle
        # (wrapper asserts n | 8 or 8 | n).  All h_t stay in vregs; for very
        # large batches this epilogue could be chunked, but it is O(N*8) only.
        hs = []
        if n % SEQ_LEN == 0:                 # chunk == rpc whole sublane rows
            rpc = n // SEQ_LEN
            h = jnp.zeros((rpc, SEQ_LEN), jnp.float32)
            whh_v = jnp.broadcast_to(whh, (rpc, SEQ_LEN))   # hoisted splat
            for t in range(SEQ_LEN):         # static unroll, T = 8
                h = jnp.tanh(s_all[t * rpc:(t + 1) * rpc, :] + whh_v * h)
                hs.append(h)
            o = jnp.concatenate(hs, axis=0)                  # (n, 8), in vregs
        else:                                # 8 % n == 0: lane sub-ranges
            h = jnp.zeros((1, n), jnp.float32)
            whh_v = jnp.broadcast_to(whh, (1, n))
            for t in range(SEQ_LEN):         # static unroll, T = 8
                row, col = (t * n) // SEQ_LEN, (t * n) % SEQ_LEN
                h = jnp.tanh(s_all[row:row + 1, col:col + n] + whh_v * h)
                hs.append(h)
            per_row = SEQ_LEN // n
            o = jnp.concatenate(
                [jnp.concatenate(hs[m * per_row:(m + 1) * per_row], axis=1)
                 for m in range(n)], axis=0)                 # (n, 8), in vregs

        # out1: Linear(seq_len*hidden -> 2); o's row-major layout already
        # equals torch's output.view(-1, 8).
        pred_ref[...] = (
            jnp.dot(o, wo_ref[...], preferred_element_type=jnp.float32)
            + bo_ref[...])


# --------------------------------- wrapper ----------------------------------
def _pick_batch_tile(n):
    """Largest tile dividing n: whole batch when small, else a multiple of 8."""
    if n <= 512:
        return n
    for t in (512, 256, 128, 64, 32, 16, 8):
        if n % t == 0:
            return t
    return n


def rnn_model_forward(x, kp):
    n, c, sh, sw = x.shape
    # torch's input1.view(seq_len, -1, 64) batch/time interleave is rectangular
    # in the (n, 8) layout only when batch | seq_len or seq_len | batch.
    assert n % SEQ_LEN == 0 or SEQ_LEN % n == 0, \
        "need batch % seq_len == 0 or seq_len % batch == 0"
    chw = c * sh * sw
    assert kp["w_pool"].shape[0] == chw, "params packed for a different C*H*W"

    x2d = x.reshape(n, chw)                     # free row-major reshape (NCHW)
    tn = _pick_batch_tile(n)
    grid = (n // tn,)

    vmem = pl.BlockSpec(memory_space=pltpu.MemorySpace.VMEM)
    smem = pl.BlockSpec(memory_space=pltpu.MemorySpace.SMEM)

    # Explicit VMEM budget: 2x double-buffered input tile + resident weights.
    # (v5e default scoped VMEM is 16 MiB; v7x physical VMEM is only 64 MiB.)
    vmem_need = (2 * tn * chw + chw * CNN_FEAT + CNN_FEAT * (SEQ_LEN + 1)
                 + n * SEQ_LEN + 2 * n * OUTPUT_DIM) * 4 + (4 << 20)
    vmem_limit = min(max(vmem_need, 16 << 20), 64 << 20)

    return pl.pallas_call(
        fused_forward_kernel,
        out_shape=jax.ShapeDtypeStruct((n, OUTPUT_DIM), jnp.float32),
        grid=grid,
        in_specs=[
            pl.BlockSpec((tn, chw), lambda i: (i, 0)),  # streamed batch tiles
            vmem,                                       # W'      (C*HW, 512)
            vmem,                                       # b_feat  (1, 512)
            vmem,                                       # W_big   (512, 8)
            smem,                                       # w_hh    (1,)
            smem,                                       # fused RNN bias (1,)
            vmem,                                       # W_out^T (8, 2)
            vmem,                                       # b_out   (1, 2)
        ],
        out_specs=pl.BlockSpec((n, OUTPUT_DIM), lambda i: (0, 0)),
        scratch_shapes=[pltpu.VMEM((n, SEQ_LEN * HIDDEN_SIZE), jnp.float32)],
        compiler_params=pltpu.CompilerParams(
            dimension_semantics=("arbitrary",),   # epilogue depends on all tiles
            vmem_limit_bytes=vmem_limit),
    )(x2d, kp["w_pool"], kp["b_feat"], kp["w_big"], kp["w_hh"], kp["bias"],
      kp["w_out_t"], kp["b_out"])


# ------------------------------ parameters ----------------------------------
def init_params(key):
    """Torch-style parameters (shapes mirror the PyTorch module)."""
    ks = jax.random.split(key, 8)

    def u(k, shape, fan_in):
        bound = 1.0 / (fan_in ** 0.5)
        return jax.random.uniform(k, shape, jnp.float32, -bound, bound)

    return {
        # CNN stand-in (GAP + 3->512 linear)
        "w_feat": u(ks[0], (3, CNN_FEAT), 3),
        "b_feat": u(ks[1], (1, CNN_FEAT), 3),
        # nn.RNN(64, 1): weight_ih (1,64), weight_hh (1,1), b_ih (1,), b_hh (1,)
        "w_ih": u(ks[2], (HIDDEN_SIZE, INPUT_FEATURES), HIDDEN_SIZE),
        "w_hh": u(ks[3], (HIDDEN_SIZE, HIDDEN_SIZE), HIDDEN_SIZE),
        "b_ih": u(ks[4], (1, HIDDEN_SIZE), HIDDEN_SIZE),
        "b_hh": u(ks[5], (1, HIDDEN_SIZE), HIDDEN_SIZE),
        # nn.Linear(8, 2)
        "w_out": u(ks[6], (OUTPUT_DIM, SEQ_LEN * HIDDEN_SIZE), SEQ_LEN * HIDDEN_SIZE),
        "b_out": u(ks[7], (1, OUTPUT_DIM), SEQ_LEN * HIDDEN_SIZE),
    }


def pack_params(p, spatial_size):
    """One-time derivation of kernel-ready tensors (outside the forward)."""
    hw = spatial_size
    # GAP folded into the projection: W'[c*HW + s, f] = w_feat[c, f] / HW, so
    # feat = x2d @ W' + b reproduces mean-pool + linear as one MXU matmul.
    # (For large spatial sizes, e.g. 224x224, keep GAP in-kernel instead.)
    w_pool = jnp.repeat(p["w_feat"], hw, axis=0) / float(hw)       # (C*HW, 512)
    # Block-diagonal tiling of W_ih^T -> (512, 8): column k holds W_ih over
    # feature block k, so feat @ w_big yields the RNN input projection for all
    # seq_len*batch flat rows, already in torch-.view order.
    w_big = jnp.kron(jnp.eye(SEQ_LEN, dtype=jnp.float32),
                     p["w_ih"].reshape(INPUT_FEATURES, HIDDEN_SIZE))
    return {
        "w_pool": w_pool,                              # (C*HW, 512)
        "b_feat": p["b_feat"],                         # (1, 512)
        "w_big": w_big,                                # (512, 8)
        "w_hh": p["w_hh"].reshape(1),                  # (1,)  SMEM scalar
        "bias": (p["b_ih"] + p["b_hh"]).reshape(1),    # (1,)  fused RNN bias
        "w_out_t": p["w_out"].T,                       # (8, 2)
        "b_out": p["b_out"],                           # (1, 2)
    }


# ------------------------- pure-JAX reference (torch semantics) -------------
def reference_forward(x, p):
    pooled = jnp.mean(x, axis=(2, 3))                            # (N, C)
    feat = pooled @ p["w_feat"] + p["b_feat"]                    # (N, 512)
    xs = feat.reshape(SEQ_LEN, -1, INPUT_FEATURES)               # torch .view
    h = jnp.zeros((xs.shape[1], HIDDEN_SIZE), jnp.float32)
    outs = []
    for t in range(SEQ_LEN):
        h = jnp.tanh(xs[t] @ p["w_ih"].T + h @ p["w_hh"].T
                     + p["b_ih"] + p["b_hh"])
        outs.append(h)
    out = jnp.stack(outs, axis=0)                                # (8, Nv, 1)
    o = out.reshape(-1, SEQ_LEN * HIDDEN_SIZE)                   # torch .view
    return o @ p["w_out"].T + p["b_out"]


if __name__ == "__main__":
    key = jax.random.PRNGKey(0)
    pkey, xkey = jax.random.split(key)
    raw_params = init_params(pkey)

    # small NCHW input (batch=2, 3 channels, 16x16 spatial)
    x = jax.random.normal(xkey, (2, 3, 16, 16), jnp.float32)
    params = pack_params(raw_params, x.shape[2] * x.shape[3])

    pred = jax.jit(rnn_model_forward)(x, params)
    jax.block_until_ready(pred)
    assert pred.shape == (2, OUTPUT_DIM), pred.shape
    assert pred.dtype == jnp.float32

    ref = reference_forward(x, raw_params)
    assert jnp.allclose(pred, ref, rtol=2e-3, atol=2e-3), (pred, ref)
    print("KERNEL_OK")
</pallas_src>

<mosaic_0001>
module attributes {stable_mosaic.version = 11 : i64} {
  func.func @fused_forward_kernel(%arg0: i32, %arg1: memref<2x768xf32, #tpu.memory_space<vmem>>, %arg2: memref<768x512xf32, #tpu.memory_space<vmem>>, %arg3: memref<1x512xf32, #tpu.memory_space<vmem>>, %arg4: memref<512x8xf32, #tpu.memory_space<vmem>>, %arg5: memref<1xf32, #tpu.memory_space<smem>>, %arg6: memref<1xf32, #tpu.memory_space<smem>>, %arg7: memref<8x2xf32, #tpu.memory_space<vmem>>, %arg8: memref<1x2xf32, #tpu.memory_space<vmem>>, %arg9: memref<2x2xf32, #tpu.memory_space<vmem>>, %arg10: memref<2x8xf32, #tpu.memory_space<vmem>>) attributes {dimension_semantics = [#tpu.dimension_semantics<arbitrary>], iteration_bounds = array<i64: 1>, scalar_prefetch = 0 : i64, scratch_operands = 1 : i64, tpu.core_type = #tpu.core_type<tc>, window_params = [{transform_indices = @transform_0, window_bounds = array<i64: 2, 768>}, {pipeline_mode = #tpu.pipeline_mode<synchronous>, transform_indices = @transform_1, window_bounds = array<i64: 768, 512>}, {pipeline_mode = #tpu.pipeline_mode<synchronous>, transform_indices = @transform_2, window_bounds = array<i64: 1, 512>}, {pipeline_mode = #tpu.pipeline_mode<synchronous>, transform_indices = @transform_3, window_bounds = array<i64: 512, 8>}, {transform_indices = @transform_4, window_bounds = array<i64: 1>}, {transform_indices = @transform_5, window_bounds = array<i64: 1>}, {pipeline_mode = #tpu.pipeline_mode<synchronous>, transform_indices = @transform_6, window_bounds = array<i64: 8, 2>}, {pipeline_mode = #tpu.pipeline_mode<synchronous>, transform_indices = @transform_7, window_bounds = array<i64: 1, 2>}, {pipeline_mode = #tpu.pipeline_mode<synchronous>, transform_indices = @transform_8, window_bounds = array<i64: 2, 2>}]} {
    %c0 = arith.constant 0 : index
    %c0_0 = arith.constant 0 : index
    %0 = vector.load %arg1[%c0, %c0_0] : memref<2x768xf32, #tpu.memory_space<vmem>>, vector<2x768xf32>
    %c0_1 = arith.constant 0 : index
    %c0_2 = arith.constant 0 : index
    %1 = vector.load %arg2[%c0_1, %c0_2] : memref<768x512xf32, #tpu.memory_space<vmem>>, vector<768x512xf32>
    %cst = arith.constant dense<0.000000e+00> : vector<2x512xf32>
    %2 = tpu.matmul %0, %1, %cst {dimension_numbers = #tpu.dot_dimension_numbers<[1], [0], [0], [1], [0, 0, 1, 1], [], []>} : vector<2x768xf32>, vector<768x512xf32>, vector<2x512xf32> -> vector<2x512xf32>
    %c0_3 = arith.constant 0 : index
    %c0_4 = arith.constant 0 : index
    %3 = vector.load %arg3[%c0_3, %c0_4] : memref<1x512xf32, #tpu.memory_space<vmem>>, vector<1x512xf32>
    %4 = vector.broadcast %3 : vector<1x512xf32> to vector<2x512xf32>
    %5 = arith.addf %2, %4 : vector<2x512xf32>
    %c0_5 = arith.constant 0 : index
    %c0_6 = arith.constant 0 : index
    %6 = vector.load %arg4[%c0_5, %c0_6] : memref<512x8xf32, #tpu.memory_space<vmem>>, vector<512x8xf32>
    %cst_7 = arith.constant dense<0.000000e+00> : vector<2x8xf32>
    %7 = tpu.matmul %5, %6, %cst_7 {dimension_numbers = #tpu.dot_dimension_numbers<[1], [0], [0], [1], [0, 0, 1, 1], [], []>} : vector<2x512xf32>, vector<512x8xf32>, vector<2x8xf32> -> vector<2x8xf32>
    %c0_i32 = arith.constant 0 : i32
    %8 = arith.cmpi eq, %arg0, %c0_i32 : i32
    %9 = arith.extui %8 : i1 to i32
    %c0_i32_8 = arith.constant 0 : i32
    %10 = arith.cmpi ne, %9, %c0_i32_8 : i32
    scf.if %10 {
      %c0_9 = arith.constant 0 : index
      %11 = memref.load %arg5[%c0_9] : memref<1xf32, #tpu.memory_space<smem>>
      %c0_10 = arith.constant 0 : index
      %12 = memref.load %arg6[%c0_10] : memref<1xf32, #tpu.memory_space<smem>>
      %13 = vector.broadcast %12 : f32 to vector<2x8xf32>
      %14 = arith.addf %7, %13 : vector<2x8xf32>
      %cst_11 = arith.constant 0.000000e+00 : f32
      %15 = vector.broadcast %cst_11 : f32 to vector<1x2xf32>
      %16 = vector.broadcast %11 : f32 to vector<1x2xf32>
      %17 = vector.extract_strided_slice %14 {offsets = [0, 0], sizes = [1, 2], strides = [1, 1]} : vector<2x8xf32> to vector<1x2xf32>
      %18 = arith.mulf %16, %15 : vector<1x2xf32>
      %19 = arith.addf %17, %18 : vector<1x2xf32>
      %20 = math.tanh %19 : vector<1x2xf32>
      %21 = vector.extract_strided_slice %14 {offsets = [0, 2], sizes = [1, 2], strides = [1, 1]} : vector<2x8xf32> to vector<1x2xf32>
      %22 = arith.mulf %16, %20 : vector<1x2xf32>
      %23 = arith.addf %21, %22 : vector<1x2xf32>
      %24 = math.tanh %23 : vector<1x2xf32>
      %25 = vector.extract_strided_slice %14 {offsets = [0, 4], sizes = [1, 2], strides = [1, 1]} : vector<2x8xf32> to vector<1x2xf32>
      %26 = arith.mulf %16, %24 : vector<1x2xf32>
      %27 = arith.addf %25, %26 : vector<1x2xf32>
      %28 = math.tanh %27 : vector<1x2xf32>
      %29 = vector.extract_strided_slice %14 {offsets = [0, 6], sizes = [1, 2], strides = [1, 1]} : vector<2x8xf32> to vector<1x2xf32>
      %30 = arith.mulf %16, %28 : vector<1x2xf32>
      %31 = arith.addf %29, %30 : vector<1x2xf32>
      %32 = math.tanh %31 : vector<1x2xf32>
      %33 = vector.extract_strided_slice %14 {offsets = [1, 0], sizes = [1, 2], strides = [1, 1]} : vector<2x8xf32> to vector<1x2xf32>
      %34 = arith.mulf %16, %32 : vector<1x2xf32>
      %35 = arith.addf %33, %34 : vector<1x2xf32>
      %36 = math.tanh %35 : vector<1x2xf32>
      %37 = vector.extract_strided_slice %14 {offsets = [1, 2], sizes = [1, 2], strides = [1, 1]} : vector<2x8xf32> to vector<1x2xf32>
      %38 = arith.mulf %16, %36 : vector<1x2xf32>
      %39 = arith.addf %37, %38 : vector<1x2xf32>
      %40 = math.tanh %39 : vector<1x2xf32>
      %41 = vector.extract_strided_slice %14 {offsets = [1, 4], sizes = [1, 2], strides = [1, 1]} : vector<2x8xf32> to vector<1x2xf32>
      %42 = arith.mulf %16, %40 : vector<1x2xf32>
      %43 = arith.addf %41, %42 : vector<1x2xf32>
      %44 = math.tanh %43 : vector<1x2xf32>
      %45 = vector.extract_strided_slice %14 {offsets = [1, 6], sizes = [1, 2], strides = [1, 1]} : vector<2x8xf32> to vector<1x2xf32>
      %46 = arith.mulf %16, %44 : vector<1x2xf32>
      %47 = arith.addf %45, %46 : vector<1x2xf32>
      %48 = math.tanh %47 : vector<1x2xf32>
      %49 = tpu.concatenate %20, %24, %28, %32 in 1 : vector<1x2xf32>, vector<1x2xf32>, vector<1x2xf32>, vector<1x2xf32> -> vector<1x8xf32>
      %50 = tpu.concatenate %36, %40, %44, %48 in 1 : vector<1x2xf32>, vector<1x2xf32>, vector<1x2xf32>, vector<1x2xf32> -> vector<1x8xf32>
      %51 = tpu.concatenate %49, %50 in 0 : vector<1x8xf32>, vector<1x8xf32> -> vector<2x8xf32>
      %c0_12 = arith.constant 0 : index
      %c0_13 = arith.constant 0 : index
      %52 = vector.load %arg7[%c0_12, %c0_13] : memref<8x2xf32, #tpu.memory_space<vmem>>, vector<8x2xf32>
      %cst_14 = arith.constant dense<0.000000e+00> : vector<2x2xf32>
      %53 = tpu.matmul %51, %52, %cst_14 {dimension_numbers = #tpu.dot_dimension_numbers<[1], [0], [0], [1], [0, 0, 1, 1], [], []>} : vector<2x8xf32>, vector<8x2xf32>, vector<2x2xf32> -> vector<2x2xf32>
      %c0_15 = arith.constant 0 : index
      %c0_16 = arith.constant 0 : index
      %54 = vector.load %arg8[%c0_15, %c0_16] : memref<1x2xf32, #tpu.memory_space<vmem>>, vector<1x2xf32>
      %55 = vector.broadcast %54 : vector<1x2xf32> to vector<2x2xf32>
      %56 = arith.addf %53, %55 : vector<2x2xf32>
      %c0_17 = arith.constant 0 : index
      %c0_18 = arith.constant 0 : index
      %57 = vector.load %arg9[%c0_17, %c0_18] : memref<2x2xf32, #tpu.memory_space<vmem>>, vector<2x2xf32>
      tpu.vector_store %arg9[%c0_17, %c0_18], %56 {strides = array<i32>} : memref<2x2xf32, #tpu.memory_space<vmem>>, vector<2x2xf32>,
    } else {
    }
    return
  }
  func.func @transform_0(%arg0: i32) -> (i32, i32) {
    %c0_i32 = arith.constant 0 : i32
    %c0_i32_0 = arith.constant 0 : i32
    return %arg0, %c0_i32 : i32, i32
  }
  func.func @transform_1(%arg0: i32) -> (i32, i32) {
    %c0_i32 = arith.constant 0 : i32
    %c0_i32_0 = arith.constant 0 : i32
    %c0_i32_1 = arith.constant 0 : i32
    return %c0_i32, %c0_i32_0 : i32, i32
  }
  func.func @transform_2(%arg0: i32) -> (i32, i32) {
    %c0_i32 = arith.constant 0 : i32
    %c0_i32_0 = arith.constant 0 : i32
    %c0_i32_1 = arith.constant 0 : i32
    return %c0_i32, %c0_i32_0 : i32, i32
  }
  func.func @transform_3(%arg0: i32) -> (i32, i32) {
    %c0_i32 = arith.constant 0 : i32
    %c0_i32_0 = arith.constant 0 : i32
    %c0_i32_1 = arith.constant 0 : i32
    return %c0_i32, %c0_i32_0 : i32, i32
  }
  func.func @transform_4(%arg0: i32) -> i32 {
    %c0_i32 = arith.constant 0 : i32
    %c0_i32_0 = arith.constant 0 : i32
    return %c0_i32 : i32
  }
  func.func @transform_5(%arg0: i32) -> i32 {
    %c0_i32 = arith.constant 0 : i32
    %c0_i32_0 = arith.constant 0 : i32
    return %c0_i32 : i32
  }
  func.func @transform_6(%arg0: i32) -> (i32, i32) {
    %c0_i32 = arith.constant 0 : i32
    %c0_i32_0 = arith.constant 0 : i32
    %c0_i32_1 = arith.constant 0 : i32
    return %c0_i32, %c0_i32_0 : i32, i32
  }
  func.func @transform_7(%arg0: i32) -> (i32, i32) {
    %c0_i32 = arith.constant 0 : i32
    %c0_i32_0 = arith.constant 0 : i32
    %c0_i32_1 = arith.constant 0 : i32
    return %c0_i32, %c0_i32_0 : i32, i32
  }
  func.func @transform_8(%arg0: i32) -> (i32, i32) {
    %c0_i32 = arith.constant 0 : i32
    %c0_i32_0 = arith.constant 0 : i32
    %c0_i32_1 = arith.constant 0 : i32
    return %c0_i32, %c0_i32_0 : i32, i32
  }
}

</mosaic_0001>

<llo_original>
// kernel: rnn_model_forward.1
$region0: #{rnn_model_forward.1}
  #allocation0 [shape = 'u32[]', space=smem, size = 0x4, offset = 0x4, fixed_abs, tag = 'smem constant byte address 0x4 - core index']
  #allocation1 [shape = 'u32[144,128]{1,0:T(1,128)}', space=vmem, size = 0x12000, scoped, tag = 'internal scratch']
  #allocation2 [shape = 'f32[2,8]{1,0:T(2,128)}', space=vmem, size = 0x400, scoped, tag = 'scratch operand']
  #allocation3 [shape = 'f32[1]{0:T(128)S(6)}', space=smem, size = 0x200, scoped, tag = 'scoped memory for rnn_model_forward.1']
  #allocation4 [shape = 'f32[1]{0:T(128)S(6)}', space=smem, size = 0x200, scoped, tag = 'scoped memory for rnn_model_forward.1']
  %s0 = inlined_call_operand.vmem [shape: f32[2,768], index: 0, kind: input, shape index: {}]
  %s1 = inlined_call_operand.hbm [shape: f32[768,512], index: 1, kind: input, shape index: {}]
  %s2 = inlined_call_operand.hbm [shape: f32[1,512], index: 2, kind: input, shape index: {}]
  %s3 = inlined_call_operand.vmem [shape: f32[512,8], index: 3, kind: input, shape index: {}]
  %s4 = inlined_call_operand.<no memory space> [shape: f32[1], index: 4, kind: input, shape index: {}]
  %s5 = inlined_call_operand.<no memory space> [shape: f32[1], index: 5, kind: input, shape index: {}]
  %s6 = inlined_call_operand.vmem [shape: f32[8,2], index: 6, kind: input, shape index: {}]
  %s7 = inlined_call_operand.hbm [shape: f32[1,2], index: 7, kind: input, shape index: {}]
  %s8 = inlined_call_operand.hbm [shape: f32[2,2], index: 8, kind: output, shape index: {}]
  %s9 = sld [smem:[#allocation0]]
  $region58: #{rnn_model_forward.1} parent=0
    _
  %s11 = ssub.s32 1, %s9
  %s12 = scalar_select 0, %s11, %s9
  %13 = sst [smem:[#allocation3]] %s4
  %14 = sst [smem:[#allocation4]] %s5
  $region1: #{rnn_model_forward.1} parent=0
    #allocation5 [shape = 'u8[1572864]{0}', space=vmem, size = 0x180000, scoped, tag = 'input window, operand 1, single buffered']
    #allocation6 [shape = 's32[1]{0}', space=sflag, size = 0x4, scoped, tag = 'scoped memory for rnn_model_forward.1']
    #allocation7 [shape = 's32[1]{0}', space=sflag, size = 0x4, scoped, tag = 'scoped memory for rnn_model_forward.1']
    #allocation8 [shape = 'u8[2048]{0}', space=vmem, size = 0x800, scoped, tag = 'input window, operand 2, single buffered']
    #allocation9 [shape = 's32[1]{0}', space=sflag, size = 0x4, scoped, tag = 'scoped memory for rnn_model_forward.1']
    #allocation10 [shape = 'u8[512]{0}', space=vmem, size = 0x400, scoped, tag = 'input window, operand 7, single buffered']
    #allocation11 [shape = 'u8[1024]{0}', space=vmem, size = 0x400, scoped, tag = 'output window, operand 0, single buffered']
    %15 = vsyncpa [#allocation6], 0
    %16 = vsyncpa [#allocation9], 0
    %17 = vsyncpa [#allocation7], 0
    // Predicated region
    $region2: #{rnn_model_forward.1} parent=1 // pred_check
      _
    $region3: #{rnn_model_forward.1} parent=1 // pred_check_branch
      %19 = sbr.rel (0) target = $region5
    $region4: #{rnn_model_forward.1} parent=1 // pred_region
      _
    $region5: #{rnn_model_forward.1} parent=1 // pred_fallthru
      _
    // Predicated region
    $region6: #{rnn_model_forward.1} parent=1 // pred_check
      _
    $region7: #{rnn_model_forward.1} parent=1 // pred_check_branch
      %21 = sbr.rel (0) target = $region9
    $region8: #{rnn_model_forward.1} parent=1 // pred_region
      %s23 = ssub.s32 49152, 49152
      %24 = vsyncadd [#allocation6], %s23
      %s25 = sshll.u32 [#allocation5], 4
      %s26 = int_to_ptr.vmem [resolvable:$true] %s25
      %31 = dma.hbm_to_vmem [thread:$0]  %s1, 49152, %s26, [#allocation6], 512, 512, 32
    $region9: #{rnn_model_forward.1} parent=1 // pred_fallthru
      _
    // Predicated region
    $region10: #{rnn_model_forward.1} parent=1 // pred_check
      _
    $region11: #{rnn_model_forward.1} parent=1 // pred_check_branch
      %33 = sbr.rel (0) target = $region13
    $region12: #{rnn_model_forward.1} parent=1 // pred_region
      %s35 = ssub.s32 64, 64
      %36 = vsyncadd [#allocation9], %s35
      %s38 = sshll.u32 [#allocation8], 4
      %s39 = int_to_ptr.vmem [resolvable:$true] %s38
      %41 = dma.hbm_to_vmem [thread:$0]  %s2, 64, %s39, [#allocation9]
    $region13: #{rnn_model_forward.1} parent=1 // pred_fallthru
      _
    // Predicated region
    $region14: #{rnn_model_forward.1} parent=1 // pred_check
      _
    $region15: #{rnn_model_forward.1} parent=1 // pred_check_branch
      %43 = sbr.rel (0) target = $region17
    $region16: #{rnn_model_forward.1} parent=1 // pred_region
      _
    $region17: #{rnn_model_forward.1} parent=1 // pred_fallthru
      _
    // Predicated region
    $region18: #{rnn_model_forward.1} parent=1 // pred_check
      _
    $region19: #{rnn_model_forward.1} parent=1 // pred_check_branch
      %45 = sbr.rel (0) target = $region21
    $region20: #{rnn_model_forward.1} parent=1 // pred_region
      _
    $region21: #{rnn_model_forward.1} parent=1 // pred_fallthru
      _
    // Predicated region
    $region22: #{rnn_model_forward.1} parent=1 // pred_check
      _
    $region23: #{rnn_model_forward.1} parent=1 // pred_check_branch
      %47 = sbr.rel (0) target = $region25
    $region24: #{rnn_model_forward.1} parent=1 // pred_region
      _
    $region25: #{rnn_model_forward.1} parent=1 // pred_fallthru
      _
    // Predicated region
    $region26: #{rnn_model_forward.1} parent=1 // pred_check
      _
    $region27: #{rnn_model_forward.1} parent=1 // pred_check_branch
      %49 = sbr.rel (0) target = $region29
    $region28: #{rnn_model_forward.1} parent=1 // pred_region
      _
    $region29: #{rnn_model_forward.1} parent=1 // pred_fallthru
      _
    // Predicated region
    $region30: #{rnn_model_forward.1} parent=1 // pred_check
      _
    $region31: #{rnn_model_forward.1} parent=1 // pred_check_branch
      %51 = sbr.rel (0) target = $region33
    $region32: #{rnn_model_forward.1} parent=1 // pred_region
      %s53 = ssub.s32 16, 16
      %54 = vsyncadd [#allocation9], %s53
      %s56 = sshll.u32 [#allocation10], 4
      %s57 = int_to_ptr.vmem [resolvable:$true] %s56
      %59 = dma.hbm_to_vmem [thread:$0]  %s7, 16, %s57, [#allocation9]
    $region33: #{rnn_model_forward.1} parent=1 // pred_fallthru
      _
    // Predicated region
    $region34: #{rnn_model_forward.1} parent=1 // pred_check
      _
    $region35: #{rnn_model_forward.1} parent=1 // pred_check_branch
      %61 = sbr.rel (0) target = $region37
    $region36: #{rnn_model_forward.1} parent=1 // pred_region
      %62 = dma.done [#allocation6], 49152
    $region37: #{rnn_model_forward.1} parent=1 // pred_fallthru
      _
    // Predicated region
    $region38: #{rnn_model_forward.1} parent=1 // pred_check
      _
    $region39: #{rnn_model_forward.1} parent=1 // pred_check_branch
      %64 = sbr.rel (0) target = $region41
    $region40: #{rnn_model_forward.1} parent=1 // pred_region
      %65 = dma.done [#allocation9], 64
    $region41: #{rnn_model_forward.1} parent=1 // pred_fallthru
      _
    // Predicated region
    $region42: #{rnn_model_forward.1} parent=1 // pred_check
      _
    $region43: #{rnn_model_forward.1} parent=1 // pred_check_branch
      %67 = sbr.rel (0) target = $region45
    $region44: #{rnn_model_forward.1} parent=1 // pred_region
      %68 = dma.done [#allocation9], 16
    $region45: #{rnn_model_forward.1} parent=1 // pred_fallthru
      _
    %v69 = vld [vmem:[%s0] sm:$0xff]
    %v70 = vld [vmem:[%s0 + $0x8] sm:$0xf]
    %v71 = vld [vmem:[#allocation5] sm:$0xff]
    %v72 = vld [vmem:[#allocation5 + $0x8] sm:$0xff]
    %v73 = vld [vmem:[#allocation5 + $0x10] sm:$0xff]
    %v74 = vld [vmem:[#allocation5 + $0x18] sm:$0xff]
    %v75 = vld [vmem:[#allocation5 + $0x20] sm:$0xff]
    %v76 = vld [vmem:[#allocation5 + $0x28] sm:$0xff]
    %v77 = vld [vmem:[#allocation5 + $0x30] sm:$0xff]
    %v78 = vld [vmem:[#allocation5 + $0x38] sm:$0xff]
    %v79 = vld [vmem:[#allocation5 + $0x40] sm:$0xff]
    %v80 = vld [vmem:[#allocation5 + $0x48] sm:$0xff]
    %v81 = vld [vmem:[#allocation5 + $0x50] sm:$0xff]
    %v82 = vld [vmem:[#allocation5 + $0x58] sm:$0xff]
    %v83 = vld [vmem:[#allocation5 + $0x60] sm:$0xff]
    %v84 = vld [vmem:[#allocation5 + $0x68] sm:$0xff]
    %v85 = vld [vmem:[#allocation5 + $0x70] sm:$0xff]
    %v86 = vld [vmem:[#allocation5 + $0x78] sm:$0xff]
    %v87 = vld [vmem:[#allocation5 + $0x80] sm:$0xff]
    %v88 = vld [vmem:[#allocation5 + $0x88] sm:$0xff]
    %v89 = vld [vmem:[#allocation5 + $0x90] sm:$0xff]
    %v90 = vld [vmem:[#allocation5 + $0x98] sm:$0xff]
    %v91 = vld [vmem:[#allocation5 + $0xa0] sm:$0xff]
    %v92 = vld [vmem:[#allocation5 + $0xa8] sm:$0xff]
    %v93 = vld [vmem:[#allocation5 + $0xb0] sm:$0xff]
    %v94 = vld [vmem:[#allocation5 + $0xb8] sm:$0xff]
    %v95 = vld [vmem:[#allocation5 + $0xc0] sm:$0xff]
    %v96 = vld [vmem:[#allocation5 + $0xc8] sm:$0xff]
    %v97 = vld [vmem:[#allocation5 + $0xd0] sm:$0xff]
    %v98 = vld [vmem:[#allocation5 + $0xd8] sm:$0xff]
    %v99 = vld [vmem:[#allocation5 + $0xe0] sm:$0xff]
    %v100 = vld [vmem:[#allocation5 + $0xe8] sm:$0xff]
    %v101 = vld [vmem:[#allocation5 + $0xf0] sm:$0xff]
    %v102 = vld [vmem:[#allocation5 + $0xf8] sm:$0xff]
    %v103 = vld [vmem:[#allocation5 + $0x100] sm:$0xff]
    %v104 = vld [vmem:[#allocation5 + $0x108] sm:$0xff]
    %v105 = vld [vmem:[#allocation5 + $0x110] sm:$0xff]
    %v106 = vld [vmem:[#allocation5 + $0x118] sm:$0xff]
    %v107 = vld [vmem:[#allocation5 + $0x120] sm:$0xff]
    %v108 = vld [vmem:[#allocation5 + $0x128] sm:$0xff]
    %v109 = vld [vmem:[#allocation5 + $0x130] sm:$0xff]
    %v110 = vld [vmem:[#allocation5 + $0x138] sm:$0xff]
    %v111 = vld [vmem:[#allocation5 + $0x140] sm:$0xff]
    %v112 = vld [vmem:[#allocation5 + $0x148] sm:$0xff]
    %v113 = vld [vmem:[#allocation5 + $0x150] sm:$0xff]
    %v114 = vld [vmem:[#allocation5 + $0x158] sm:$0xff]
    %v115 = vld [vmem:[#allocation5 + $0x160] sm:$0xff]
    %v116 = vld [vmem:[#allocation5 + $0x168] sm:$0xff]
    %v117 = vld [vmem:[#allocation5 + $0x170] sm:$0xff]
    %v118 = vld [vmem:[#allocation5 + $0x178] sm:$0xff]
    %v119 = vld [vmem:[#allocation5 + $0x180] sm:$0xff]
    %v120 = vld [vmem:[#allocation5 + $0x188] sm:$0xff]
    %v121 = vld [vmem:[#allocation5 + $0x190] sm:$0xff]
    %v122 = vld [vmem:[#allocation5 + $0x198] sm:$0xff]
    %v123 = vld [vmem:[#allocation5 + $0x1a0] sm:$0xff]
    %v124 = vld [vmem:[#allocation5 + $0x1a8] sm:$0xff]
    %v125 = vld [vmem:[#allocation5 + $0x1b0] sm:$0xff]
    %v126 = vld [vmem:[#allocation5 + $0x1b8] sm:$0xff]
    %v127 = vld [vmem:[#allocation5 + $0x1c0] sm:$0xff]
    %v128 = vld [vmem:[#allocation5 + $0x1c8] sm:$0xff]
    %v129 = vld [vmem:[#allocation5 + $0x1d0] sm:$0xff]
    %v130 = vld [vmem:[#allocation5 + $0x1d8] sm:$0xff]
    %v131 = vld [vmem:[#allocation5 + $0x1e0] sm:$0xff]
    %v132 = vld [vmem:[#allocation5 + $0x1e8] sm:$0xff]
    %v133 = vld [vmem:[#allocation5 + $0x1f0] sm:$0xff]
    %v134 = vld [vmem:[#allocation5 + $0x1f8] sm:$0xff]
    %v135 = vld [vmem:[#allocation5 + $0x200] sm:$0xff]
    %v136 = vld [vmem:[#allocation5 + $0x208] sm:$0xff]
    %v137 = vld [vmem:[#allocation5 + $0x210] sm:$0xff]
    %v138 = vld [vmem:[#allocation5 + $0x218] sm:$0xff]
    %v139 = vld [vmem:[#allocation5 + $0x220] sm:$0xff]
    %v140 = vld [vmem:[#allocation5 + $0x228] sm:$0xff]
    %v141 = vld [vmem:[#allocation5 + $0x230] sm:$0xff]
    %v142 = vld [vmem:[#allocation5 + $0x238] sm:$0xff]
    %v143 = vld [vmem:[#allocation5 + $0x240] sm:$0xff]
    %v144 = vld [vmem:[#allocation5 + $0x248] sm:$0xff]
    %v145 = vld [vmem:[#allocation5 + $0x250] sm:$0xff]
    %v146 = vld [vmem:[#allocation5 + $0x258] sm:$0xff]
    %v147 = vld [vmem:[#allocation5 + $0x260] sm:$0xff]
    %v148 = vld [vmem:[#allocation5 + $0x268] sm:$0xff]
    %v149 = vld [vmem:[#allocation5 + $0x270] sm:$0xff]
    %v150 = vld [vmem:[#allocation5 + $0x278] sm:$0xff]
    %v151 = vld [vmem:[#allocation5 + $0x280] sm:$0xff]
    %v152 = vld [vmem:[#allocation5 + $0x288] sm:$0xff]
    %v153 = vld [vmem:[#allocation5 + $0x290] sm:$0xff]
    %v154 = vld [vmem:[#allocation5 + $0x298] sm:$0xff]
    %v155 = vld [vmem:[#allocation5 + $0x2a0] sm:$0xff]
    %v156 = vld [vmem:[#allocation5 + $0x2a8] sm:$0xff]
    %v157 = vld [vmem:[#allocation5 + $0x2b0] sm:$0xff]
    %v158 = vld [vmem:[#allocation5 + $0x2b8] sm:$0xff]
    %v159 = vld [vmem:[#allocation5 + $0x2c0] sm:$0xff]
    %v160 = vld [vmem:[#allocation5 + $0x2c8] sm:$0xff]
    %v161 = vld [vmem:[#allocation5 + $0x2d0] sm:$0xff]
    %v162 = vld [vmem:[#allocation5 + $0x2d8] sm:$0xff]
    %v163 = vld [vmem:[#allocation5 + $0x2e0] sm:$0xff]
    %v164 = vld [vmem:[#allocation5 + $0x2e8] sm:$0xff]
    %v165 = vld [vmem:[#allocation5 + $0x2f0] sm:$0xff]
    %v166 = vld [vmem:[#allocation5 + $0x2f8] sm:$0xff]
    %v167 = vld [vmem:[#allocation5 + $0x300] sm:$0xff]
    %v168 = vld [vmem:[#allocation5 + $0x308] sm:$0xff]
    %v169 = vld [vmem:[#allocation5 + $0x310] sm:$0xff]
    %v170 = vld [vmem:[#allocation5 + $0x318] sm:$0xff]
    %v171 = vld [vmem:[#allocation5 + $0x320] sm:$0xff]
    %v172 = vld [vmem:[#allocation5 + $0x328] sm:$0xff]
    %v173 = vld [vmem:[#allocation5 + $0x330] sm:$0xff]
    %v174 = vld [vmem:[#allocation5 + $0x338] sm:$0xff]
    %v175 = vld [vmem:[#allocation5 + $0x340] sm:$0xff]
    %v176 = vld [vmem:[#allocation5 + $0x348] sm:$0xff]
    %v177 = vld [vmem:[#allocation5 + $0x350] sm:$0xff]
    %v178 = vld [vmem:[#allocation5 + $0x358] sm:$0xff]
    %v179 = vld [vmem:[#allocation5 + $0x360] sm:$0xff]
    %v180 = vld [vmem:[#allocation5 + $0x368] sm:$0xff]
    %v181 = vld [vmem:[#allocation5 + $0x370] sm:$0xff]
    %v182 = vld [vmem:[#allocation5 + $0x378] sm:$0xff]
    %v183 = vld [vmem:[#allocation5 + $0x380] sm:$0xff]
    %v184 = vld [vmem:[#allocation5 + $0x388] sm:$0xff]
    %v185 = vld [vmem:[#allocation5 + $0x390] sm:$0xff]
    %v186 = vld [vmem:[#allocation5 + $0x398] sm:$0xff]
    %v187 = vld [vmem:[#allocation5 + $0x3a0] sm:$0xff]
    %v188 = vld [vmem:[#allocation5 + $0x3a8] sm:$0xff]
    %v189 = vld [vmem:[#allocation5 + $0x3b0] sm:$0xff]
    %v190 = vld [vmem:[#allocation5 + $0x3b8] sm:$0xff]
    %v191 = vld [vmem:[#allocation5 + $0x3c0] sm:$0xff]
    %v192 = vld [vmem:[#allocation5 + $0x3c8] sm:$0xff]
    %v193 = vld [vmem:[#allocation5 + $0x3d0] sm:$0xff]
    %v194 = vld [vmem:[#allocation5 + $0x3d8] sm:$0xff]
    %v195 = vld [vmem:[#allocation5 + $0x3e0] sm:$0xff]
    %v196 = vld [vmem:[#allocation5 + $0x3e8] sm:$0xff]
    %v197 = vld [vmem:[#allocation5 + $0x3f0] sm:$0xff]
    %v198 = vld [vmem:[#allocation5 + $0x3f8] sm:$0xff]
    %v199 = vld [vmem:[#allocation5 + $0x400] sm:$0xff]
    %v200 = vld [vmem:[#allocation5 + $0x408] sm:$0xff]
    %v201 = vld [vmem:[#allocation5 + $0x410] sm:$0xff]
    %v202 = vld [vmem:[#allocation5 + $0x418] sm:$0xff]
    %v203 = vld [vmem:[#allocation5 + $0x420] sm:$0xff]
    %v204 = vld [vmem:[#allocation5 + $0x428] sm:$0xff]
    %v205 = vld [vmem:[#allocation5 + $0x430] sm:$0xff]
    %v206 = vld [vmem:[#allocation5 + $0x438] sm:$0xff]
    %v207 = vld [vmem:[#allocation5 + $0x440] sm:$0xff]
    %v208 = vld [vmem:[#allocation5 + $0x448] sm:$0xff]
    %v209 = vld [vmem:[#allocation5 + $0x450] sm:$0xff]
    %v210 = vld [vmem:[#allocation5 + $0x458] sm:$0xff]
    %v211 = vld [vmem:[#allocation5 + $0x460] sm:$0xff]
    %v212 = vld [vmem:[#allocation5 + $0x468] sm:$0xff]
    %v213 = vld [vmem:[#allocation5 + $0x470] sm:$0xff]
    %v214 = vld [vmem:[#allocation5 + $0x478] sm:$0xff]
    %v215 = vld [vmem:[#allocation5 + $0x480] sm:$0xff]
    %v216 = vld [vmem:[#allocation5 + $0x488] sm:$0xff]
    %v217 = vld [vmem:[#allocation5 + $0x490] sm:$0xff]
    %v218 = vld [vmem:[#allocation5 + $0x498] sm:$0xff]
    %v219 = vld [vmem:[#allocation5 + $0x4a0] sm:$0xff]
    %v220 = vld [vmem:[#allocation5 + $0x4a8] sm:$0xff]
    %v221 = vld [vmem:[#allocation5 + $0x4b0] sm:$0xff]
    %v222 = vld [vmem:[#allocation5 + $0x4b8] sm:$0xff]
    %v223 = vld [vmem:[#allocation5 + $0x4c0] sm:$0xff]
    %v224 = vld [vmem:[#allocation5 + $0x4c8] sm:$0xff]
    %v225 = vld [vmem:[#allocation5 + $0x4d0] sm:$0xff]
    %v226 = vld [vmem:[#allocation5 + $0x4d8] sm:$0xff]
    %v227 = vld [vmem:[#allocation5 + $0x4e0] sm:$0xff]
    %v228 = vld [vmem:[#allocation5 + $0x4e8] sm:$0xff]
    %v229 = vld [vmem:[#allocation5 + $0x4f0] sm:$0xff]
    %v230 = vld [vmem:[#allocation5 + $0x4f8] sm:$0xff]
    %v231 = vld [vmem:[#allocation5 + $0x500] sm:$0xff]
    %v232 = vld [vmem:[#allocation5 + $0x508] sm:$0xff]
    %v233 = vld [vmem:[#allocation5 + $0x510] sm:$0xff]
    %v234 = vld [vmem:[#allocation5 + $0x518] sm:$0xff]
    %v235 = vld [vmem:[#allocation5 + $0x520] sm:$0xff]
    %v236 = vld [vmem:[#allocation5 + $0x528] sm:$0xff]
    %v237 = vld [vmem:[#allocation5 + $0x530] sm:$0xff]
    %v238 = vld [vmem:[#allocation5 + $0x538] sm:$0xff]
    %v239 = vld [vmem:[#allocation5 + $0x540] sm:$0xff]
    %v240 = vld [vmem:[#allocation5 + $0x548] sm:$0xff]
    %v241 = vld [vmem:[#allocation5 + $0x550] sm:$0xff]
    %v242 = vld [vmem:[#allocation5 + $0x558] sm:$0xff]
    %v243 = vld [vmem:[#allocation5 + $0x560] sm:$0xff]
    %v244 = vld [vmem:[#allocation5 + $0x568] sm:$0xff]
    %v245 = vld [vmem:[#allocation5 + $0x570] sm:$0xff]
    %v246 = vld [vmem:[#allocation5 + $0x578] sm:$0xff]
    %v247 = vld [vmem:[#allocation5 + $0x580] sm:$0xff]
    %v248 = vld [vmem:[#allocation5 + $0x588] sm:$0xff]
    %v249 = vld [vmem:[#allocation5 + $0x590] sm:$0xff]
    %v250 = vld [vmem:[#allocation5 + $0x598] sm:$0xff]
    %v251 = vld [vmem:[#allocation5 + $0x5a0] sm:$0xff]
    %v252 = vld [vmem:[#allocation5 + $0x5a8] sm:$0xff]
    %v253 = vld [vmem:[#allocation5 + $0x5b0] sm:$0xff]
    %v254 = vld [vmem:[#allocation5 + $0x5b8] sm:$0xff]
    %v255 = vld [vmem:[#allocation5 + $0x5c0] sm:$0xff]
    %v256 = vld [vmem:[#allocation5 + $0x5c8] sm:$0xff]
    %v257 = vld [vmem:[#allocation5 + $0x5d0] sm:$0xff]
    %v258 = vld [vmem:[#allocation5 + $0x5d8] sm:$0xff]
    %v259 = vld [vmem:[#allocation5 + $0x5e0] sm:$0xff]
    %v260 = vld [vmem:[#allocation5 + $0x5e8] sm:$0xff]
    %v261 = vld [vmem:[#allocation5 + $0x5f0] sm:$0xff]
    %v262 = vld [vmem:[#allocation5 + $0x5f8] sm:$0xff]
    %v263 = vld [vmem:[#allocation5 + $0x600] sm:$0xff]
    %v264 = vld [vmem:[#allocation5 + $0x608] sm:$0xff]
    %v265 = vld [vmem:[#allocation5 + $0x610] sm:$0xff]
    %v266 = vld [vmem:[#allocation5 + $0x618] sm:$0xff]
    %v267 = vld [vmem:[#allocation5 + $0x620] sm:$0xff]
    %v268 = vld [vmem:[#allocation5 + $0x628] sm:$0xff]
    %v269 = vld [vmem:[#allocation5 + $0x630] sm:$0xff]
    %v270 = vld [vmem:[#allocation5 + $0x638] sm:$0xff]
    %v271 = vld [vmem:[#allocation5 + $0x640] sm:$0xff]
    %v272 = vld [vmem:[#allocation5 + $0x648] sm:$0xff]
    %v273 = vld [vmem:[#allocation5 + $0x650] sm:$0xff]
    %v274 = vld [vmem:[#allocation5 + $0x658] sm:$0xff]
    %v275 = vld [vmem:[#allocation5 + $0x660] sm:$0xff]
    %v276 = vld [vmem:[#allocation5 + $0x668] sm:$0xff]
    %v277 = vld [vmem:[#allocation5 + $0x670] sm:$0xff]
    %v278 = vld [vmem:[#allocation5 + $0x678] sm:$0xff]
    %v279 = vld [vmem:[#allocation5 + $0x680] sm:$0xff]
    %v280 = vld [vmem:[#allocation5 + $0x688] sm:$0xff]
    %v281 = vld [vmem:[#allocation5 + $0x690] sm:$0xff]
    %v282 = vld [vmem:[#allocation5 + $0x698] sm:$0xff]
    %v283 = vld [vmem:[#allocation5 + $0x6a0] sm:$0xff]
    %v284 = vld [vmem:[#allocation5 + $0x6a8] sm:$0xff]
    %v285 = vld [vmem:[#allocation5 + $0x6b0] sm:$0xff]
    %v286 = vld [vmem:[#allocation5 + $0x6b8] sm:$0xff]
    %v287 = vld [vmem:[#allocation5 + $0x6c0] sm:$0xff]
    %v288 = vld [vmem:[#allocation5 + $0x6c8] sm:$0xff]
    %v289 = vld [vmem:[#allocation5 + $0x6d0] sm:$0xff]
    %v290 = vld [vmem:[#allocation5 + $0x6d8] sm:$0xff]
    %v291 = vld [vmem:[#allocation5 + $0x6e0] sm:$0xff]
    %v292 = vld [vmem:[#allocation5 + $0x6e8] sm:$0xff]
    %v293 = vld [vmem:[#allocation5 + $0x6f0] sm:$0xff]
    %v294 = vld [vmem:[#allocation5 + $0x6f8] sm:$0xff]
    %v295 = vld [vmem:[#allocation5 + $0x700] sm:$0xff]
    %v296 = vld [vmem:[#allocation5 + $0x708] sm:$0xff]
    %v297 = vld [vmem:[#allocation5 + $0x710] sm:$0xff]
    %v298 = vld [vmem:[#allocation5 + $0x718] sm:$0xff]
    %v299 = vld [vmem:[#allocation5 + $0x720] sm:$0xff]
    %v300 = vld [vmem:[#allocation5 + $0x728] sm:$0xff]
    %v301 = vld [vmem:[#allocation5 + $0x730] sm:$0xff]
    %v302 = vld [vmem:[#allocation5 + $0x738] sm:$0xff]
    %v303 = vld [vmem:[#allocation5 + $0x740] sm:$0xff]
    %v304 = vld [vmem:[#allocation5 + $0x748] sm:$0xff]
    %v305 = vld [vmem:[#allocation5 + $0x750] sm:$0xff]
    %v306 = vld [vmem:[#allocation5 + $0x758] sm:$0xff]
    %v307 = vld [vmem:[#allocation5 + $0x760] sm:$0xff]
    %v308 = vld [vmem:[#allocation5 + $0x768] sm:$0xff]
    %v309 = vld [vmem:[#allocation5 + $0x770] sm:$0xff]
    %v310 = vld [vmem:[#allocation5 + $0x778] sm:$0xff]
    %v311 = vld [vmem:[#allocation5 + $0x780] sm:$0xff]
    %v312 = vld [vmem:[#allocation5 + $0x788] sm:$0xff]
    %v313 = vld [vmem:[#allocation5 + $0x790] sm:$0xff]
    %v314 = vld [vmem:[#allocation5 + $0x798] sm:$0xff]
    %v315 = vld [vmem:[#allocation5 + $0x7a0] sm:$0xff]
    %v316 = vld [vmem:[#allocation5 + $0x7a8] sm:$0xff]
    %v317 = vld [vmem:[#allocation5 + $0x7b0] sm:$0xff]
    %v318 = vld [vmem:[#allocation5 + $0x7b8] sm:$0xff]
    %v319 = vld [vmem:[#allocation5 + $0x7c0] sm:$0xff]
    %v320 = vld [vmem:[#allocation5 + $0x7c8] sm:$0xff]
    %v321 = vld [vmem:[#allocation5 + $0x7d0] sm:$0xff]
    %v322 = vld [vmem:[#allocation5 + $0x7d8] sm:$0xff]
    %v323 = vld [vmem:[#allocation5 + $0x7e0] sm:$0xff]
    %v324 = vld [vmem:[#allocation5 + $0x7e8] sm:$0xff]
    %v325 = vld [vmem:[#allocation5 + $0x7f0] sm:$0xff]
    %v326 = vld [vmem:[#allocation5 + $0x7f8] sm:$0xff]
    %v327 = vld [vmem:[#allocation5 + $0x800] sm:$0xff]
    %v328 = vld [vmem:[#allocation5 + $0x808] sm:$0xff]
    %v329 = vld [vmem:[#allocation5 + $0x810] sm:$0xff]
    %v330 = vld [vmem:[#allocation5 + $0x818] sm:$0xff]
    %v331 = vld [vmem:[#allocation5 + $0x820] sm:$0xff]
    %v332 = vld [vmem:[#allocation5 + $0x828] sm:$0xff]
    %v333 = vld [vmem:[#allocation5 + $0x830] sm:$0xff]
    %v334 = vld [vmem:[#allocation5 + $0x838] sm:$0xff]
    %v335 = vld [vmem:[#allocation5 + $0x840] sm:$0xff]
    %v336 = vld [vmem:[#allocation5 + $0x848] sm:$0xff]
    %v337 = vld [vmem:[#allocation5 + $0x850] sm:$0xff]
    %v338 = vld [vmem:[#allocation5 + $0x858] sm:$0xff]
    %v339 = vld [vmem:[#allocation5 + $0x860] sm:$0xff]
    %v340 = vld [vmem:[#allocation5 + $0x868] sm:$0xff]
    %v341 = vld [vmem:[#allocation5 + $0x870] sm:$0xff]
    %v342 = vld [vmem:[#allocation5 + $0x878] sm:$0xff]
    %v343 = vld [vmem:[#allocation5 + $0x880] sm:$0xff]
    %v344 = vld [vmem:[#allocation5 + $0x888] sm:$0xff]
    %v345 = vld [vmem:[#allocation5 + $0x890] sm:$0xff]
    %v346 = vld [vmem:[#allocation5 + $0x898] sm:$0xff]
    %v347 = vld [vmem:[#allocation5 + $0x8a0] sm:$0xff]
    %v348 = vld [vmem:[#allocation5 + $0x8a8] sm:$0xff]
    %v349 = vld [vmem:[#allocation5 + $0x8b0] sm:$0xff]
    %v350 = vld [vmem:[#allocation5 + $0x8b8] sm:$0xff]
    %v351 = vld [vmem:[#allocation5 + $0x8c0] sm:$0xff]
    %v352 = vld [vmem:[#allocation5 + $0x8c8] sm:$0xff]
    %v353 = vld [vmem:[#allocation5 + $0x8d0] sm:$0xff]
    %v354 = vld [vmem:[#allocation5 + $0x8d8] sm:$0xff]
    %v355 = vld [vmem:[#allocation5 + $0x8e0] sm:$0xff]
    %v356 = vld [vmem:[#allocation5 + $0x8e8] sm:$0xff]
    %v357 = vld [vmem:[#allocation5 + $0x8f0] sm:$0xff]
    %v358 = vld [vmem:[#allocation5 + $0x8f8] sm:$0xff]
    %v359 = vld [vmem:[#allocation5 + $0x900] sm:$0xff]
    %v360 = vld [vmem:[#allocation5 + $0x908] sm:$0xff]
    %v361 = vld [vmem:[#allocation5 + $0x910] sm:$0xff]
    %v362 = vld [vmem:[#allocation5 + $0x918] sm:$0xff]
    %v363 = vld [vmem:[#allocation5 + $0x920] sm:$0xff]
    %v364 = vld [vmem:[#allocation5 + $0x928] sm:$0xff]
    %v365 = vld [vmem:[#allocation5 + $0x930] sm:$0xff]
    %v366 = vld [vmem:[#allocation5 + $0x938] sm:$0xff]
    %v367 = vld [vmem:[#allocation5 + $0x940] sm:$0xff]
    %v368 = vld [vmem:[#allocation5 + $0x948] sm:$0xff]
    %v369 = vld [vmem:[#allocation5 + $0x950] sm:$0xff]
    %v370 = vld [vmem:[#allocation5 + $0x958] sm:$0xff]
    %v371 = vld [vmem:[#allocation5 + $0x960] sm:$0xff]
    %v372 = vld [vmem:[#allocation5 + $0x968] sm:$0xff]
    %v373 = vld [vmem:[#allocation5 + $0x970] sm:$0xff]
    %v374 = vld [vmem:[#allocation5 + $0x978] sm:$0xff]
    %v375 = vld [vmem:[#allocation5 + $0x980] sm:$0xff]
    %v376 = vld [vmem:[#allocation5 + $0x988] sm:$0xff]
    %v377 = vld [vmem:[#allocation5 + $0x990] sm:$0xff]
    %v378 = vld [vmem:[#allocation5 + $0x998] sm:$0xff]
    %v379 = vld [vmem:[#allocation5 + $0x9a0] sm:$0xff]
    %v380 = vld [vmem:[#allocation5 + $0x9a8] sm:$0xff]
    %v381 = vld [vmem:[#allocation5 + $0x9b0] sm:$0xff]
    %v382 = vld [vmem:[#allocation5 + $0x9b8] sm:$0xff]
    %v383 = vld [vmem:[#allocation5 + $0x9c0] sm:$0xff]
    %v384 = vld [vmem:[#allocation5 + $0x9c8] sm:$0xff]
    %v385 = vld [vmem:[#allocation5 + $0x9d0] sm:$0xff]
    %v386 = vld [vmem:[#allocation5 + $0x9d8] sm:$0xff]
    %v387 = vld [vmem:[#allocation5 + $0x9e0] sm:$0xff]
    %v388 = vld [vmem:[#allocation5 + $0x9e8] sm:$0xff]
    %v389 = vld [vmem:[#allocation5 + $0x9f0] sm:$0xff]
    %v390 = vld [vmem:[#allocation5 + $0x9f8] sm:$0xff]
    %v391 = vld [vmem:[#allocation5 + $0xa00] sm:$0xff]
    %v392 = vld [vmem:[#allocation5 + $0xa08] sm:$0xff]
    %v393 = vld [vmem:[#allocation5 + $0xa10] sm:$0xff]
    %v394 = vld [vmem:[#allocation5 + $0xa18] sm:$0xff]
    %v395 = vld [vmem:[#allocation5 + $0xa20] sm:$0xff]
    %v396 = vld [vmem:[#allocation5 + $0xa28] sm:$0xff]
    %v397 = vld [vmem:[#allocation5 + $0xa30] sm:$0xff]
    %v398 = vld [vmem:[#allocation5 + $0xa38] sm:$0xff]
    %v399 = vld [vmem:[#allocation5 + $0xa40] sm:$0xff]
    %v400 = vld [vmem:[#allocation5 + $0xa48] sm:$0xff]
    %v401 = vld [vmem:[#allocation5 + $0xa50] sm:$0xff]
    %v402 = vld [vmem:[#allocation5 + $0xa58] sm:$0xff]
    %v403 = vld [vmem:[#allocation5 + $0xa60] sm:$0xff]
    %v404 = vld [vmem:[#allocation5 + $0xa68] sm:$0xff]
    %v405 = vld [vmem:[#allocation5 + $0xa70] sm:$0xff]
    %v406 = vld [vmem:[#allocation5 + $0xa78] sm:$0xff]
    %v407 = vld [vmem:[#allocation5 + $0xa80] sm:$0xff]
    %v408 = vld [vmem:[#allocation5 + $0xa88] sm:$0xff]
    %v409 = vld [vmem:[#allocation5 + $0xa90] sm:$0xff]
    %v410 = vld [vmem:[#allocation5 + $0xa98] sm:$0xff]
    %v411 = vld [vmem:[#allocation5 + $0xaa0] sm:$0xff]
    %v412 = vld [vmem:[#allocation5 + $0xaa8] sm:$0xff]
    %v413 = vld [vmem:[#allocation5 + $0xab0] sm:$0xff]
    %v414 = vld [vmem:[#allocation5 + $0xab8] sm:$0xff]
    %v415 = vld [vmem:[#allocation5 + $0xac0] sm:$0xff]
    %v416 = vld [vmem:[#allocation5 + $0xac8] sm:$0xff]
    %v417 = vld [vmem:[#allocation5 + $0xad0] sm:$0xff]
    %v418 = vld [vmem:[#allocation5 + $0xad8] sm:$0xff]
    %v419 = vld [vmem:[#allocation5 + $0xae0] sm:$0xff]
    %v420 = vld [vmem:[#allocation5 + $0xae8] sm:$0xff]
    %v421 = vld [vmem:[#allocation5 + $0xaf0] sm:$0xff]
    %v422 = vld [vmem:[#allocation5 + $0xaf8] sm:$0xff]
    %v423 = vld [vmem:[#allocation5 + $0xb00] sm:$0xff]
    %v424 = vld [vmem:[#allocation5 + $0xb08] sm:$0xff]
    %v425 = vld [vmem:[#allocation5 + $0xb10] sm:$0xff]
    %v426 = vld [vmem:[#allocation5 + $0xb18] sm:$0xff]
    %v427 = vld [vmem:[#allocation5 + $0xb20] sm:$0xff]
    %v428 = vld [vmem:[#allocation5 + $0xb28] sm:$0xff]
    %v429 = vld [vmem:[#allocation5 + $0xb30] sm:$0xff]
    %v430 = vld [vmem:[#allocation5 + $0xb38] sm:$0xff]
    %v431 = vld [vmem:[#allocation5 + $0xb40] sm:$0xff]
    %v432 = vld [vmem:[#allocation5 + $0xb48] sm:$0xff]
    %v433 = vld [vmem:[#allocation5 + $0xb50] sm:$0xff]
    %v434 = vld [vmem:[#allocation5 + $0xb58] sm:$0xff]
    %v435 = vld [vmem:[#allocation5 + $0xb60] sm:$0xff]
    %v436 = vld [vmem:[#allocation5 + $0xb68] sm:$0xff]
    %v437 = vld [vmem:[#allocation5 + $0xb70] sm:$0xff]
    %v438 = vld [vmem:[#allocation5 + $0xb78] sm:$0xff]
    %v439 = vld [vmem:[#allocation5 + $0xb80] sm:$0xff]
    %v440 = vld [vmem:[#allocation5 + $0xb88] sm:$0xff]
    %v441 = vld [vmem:[#allocation5 + $0xb90] sm:$0xff]
    %v442 = vld [vmem:[#allocation5 + $0xb98] sm:$0xff]
    %v443 = vld [vmem:[#allocation5 + $0xba0] sm:$0xff]
    %v444 = vld [vmem:[#allocation5 + $0xba8] sm:$0xff]
    %v445 = vld [vmem:[#allocation5 + $0xbb0] sm:$0xff]
    %v446 = vld [vmem:[#allocation5 + $0xbb8] sm:$0xff]
    %v447 = vld [vmem:[#allocation5 + $0xbc0] sm:$0xff]
    %v448 = vld [vmem:[#allocation5 + $0xbc8] sm:$0xff]
    %v449 = vld [vmem:[#allocation5 + $0xbd0] sm:$0xff]
    %v450 = vld [vmem:[#allocation5 + $0xbd8] sm:$0xff]
    %v451 = vld [vmem:[#allocation5 + $0xbe0] sm:$0xff]
    %v452 = vld [vmem:[#allocation5 + $0xbe8] sm:$0xff]
    %v453 = vld [vmem:[#allocation5 + $0xbf0] sm:$0xff]
    %v454 = vld [vmem:[#allocation5 + $0xbf8] sm:$0xff]
    %v455 = vld [vmem:[#allocation8] sm:$0xf]
    %v457 = vlaneseq
    %v458 = vshrl.u32 %v457, 7
    %v459 = vsub.s32 0, %v458
    %v460 = vrot.slane %v455, %v459
    %v461 = vlaneseq
    %v462 = vshrl.u32 %v461, 7
    %v463 = vsub.s32 1, %v462
    %v464 = vrot.slane %v455, %v463
    %v465 = vlaneseq
    %v466 = vshrl.u32 %v465, 7
    %v467 = vsub.s32 2, %v466
    %v468 = vrot.slane %v455, %v467
    %v469 = vlaneseq
    %v470 = vshrl.u32 %v469, 7
    %v471 = vsub.s32 3, %v470
    %v472 = vrot.slane %v455, %v471
    %v479 = vcombine.high %v69, %v69
    %v481 = vunpack.c.l.s4 1983009808
    %v482 = vunpack.c.0.s8 %v481
    %v483 = vlaneseq
    %v484 = vshrl.u32 %v483, 7
    %v485 = vsub.s32 %v482, %v484
    %v486 = vrot.slane %v69, %v485
    %v488 = vunpack.c.l.s4 1983009808
    %v489 = vunpack.c.0.s8 %v488
    %v490 = vlaneseq
    %v491 = vshrl.u32 %v490, 7
    %v492 = vsub.s32 %v489, %v491
    %v493 = vrot.slane %v479, %v492
    %v494 = vcombine.high %v486, %v486
    %v495 = vcombine.high %v493, %v493
    %v497 = vunpack.c.l.s4 1983009808
    %v498 = vunpack.c.0.s8 %v497
    %v499 = vlaneseq
    %v500 = vshrl.u32 %v499, 7
    %v501 = vsub.s32 %v498, %v500
    %v502 = vrot.slane %v70, %v501
    %v503 = vcombine.high %v502, %v502
    %510 = vmatprep.subr.mxu0 %v132
    %511 = vmatpush1.msra.mxu0 %v131
    %512 = vmatprep.subr.mxu0 %v128
    %513 = vmatpush1.msra.mxu0 %v127
    %514 = vmatprep.subr.mxu0 %v124
    %515 = vmatpush1.msra.mxu0 %v123
    %516 = vmatprep.subr.mxu0 %v120
    %517 = vmatpush1.msra.mxu0 %v119
    %518 = vmatprep.subr.mxu0 %v116
    %519 = vmatpush1.msra.mxu0 %v115
    %520 = vmatprep.subr.mxu0 %v112
    %521 = vmatpush1.msra.mxu0 %v111
    %522 = vmatprep.subr.mxu0 %v108
    %523 = vmatpush1.msra.mxu0 %v107
    %524 = vmatprep.subr.mxu0 %v104
    %525 = vmatpush1.msra.mxu0 %v103
    %526 = vmatprep.subr.mxu0 %v100
    %527 = vmatpush1.msra.mxu0 %v99
    %528 = vmatprep.subr.mxu0 %v96
    %529 = vmatpush1.msra.mxu0 %v95
    %530 = vmatprep.subr.mxu0 %v92
    %531 = vmatpush1.msra.mxu0 %v91
    %532 = vmatprep.subr.mxu0 %v88
    %533 = vmatpush1.msra.mxu0 %v87
    %534 = vmatprep.subr.mxu0 %v84
    %535 = vmatpush1.msra.mxu0 %v83
    %536 = vmatprep.subr.mxu0 %v80
    %537 = vmatpush1.msra.mxu0 %v79
    %538 = vmatprep.subr.mxu0 %v76
    %539 = vmatpush1.msra.mxu0 %v75
    %540 = vmatprep.subr.mxu0 %v72
    %541 = vmatpush1.msra.mxu0 %v71
    %542 = vmatprep.subr.mxu0 %v196
    %543 = vmatpush2.msra.mxu0 %v195
    %544 = vmatprep.subr.mxu0 %v192
    %545 = vmatpush2.msra.mxu0 %v191
    %546 = vmatprep.subr.mxu0 %v188
    %547 = vmatpush2.msra.mxu0 %v187
    %548 = vmatprep.subr.mxu0 %v184
    %549 = vmatpush2.msra.mxu0 %v183
    %550 = vmatprep.subr.mxu0 %v180
    %551 = vmatpush2.msra.mxu0 %v179
    %552 = vmatprep.subr.mxu0 %v176
    %553 = vmatpush2.msra.mxu0 %v175
    %554 = vmatprep.subr.mxu0 %v172
    %555 = vmatpush2.msra.mxu0 %v171
    %556 = vmatprep.subr.mxu0 %v168
    %557 = vmatpush2.msra.mxu0 %v167
    %558 = vmatprep.subr.mxu0 %v164
    %559 = vmatpush2.msra.mxu0 %v163
    %560 = vmatprep.subr.mxu0 %v160
    %561 = vmatpush2.msra.mxu0 %v159
    %562 = vmatprep.subr.mxu0 %v156
    %563 = vmatpush2.msra.mxu0 %v155
    %564 = vmatprep.subr.mxu0 %v152
    %565 = vmatpush2.msra.mxu0 %v151
    %566 = vmatprep.subr.mxu0 %v148
    %567 = vmatpush2.msra.mxu0 %v147
    %568 = vmatprep.subr.mxu0 %v144
    %569 = vmatpush2.msra.mxu0 %v143
    %570 = vmatprep.subr.mxu0 %v140
    %571 = vmatpush2.msra.mxu0 %v139
    %572 = vmatprep.subr.mxu0 %v136
    %573 = vmatpush2.msra.mxu0 %v135
    %574 = vmatprep.mubr.f32.mxu0 %v494
    %575 = vmatmul.mubr.f32.gmra.mxu0 %v486
    %v576 = vpop.f32.mrf.mxu0
    %v577 = vadd.f32 %v460, %v576
    %v578 = vpop.f32.mrf.mxu0
    %v579 = vadd.f32 %v464, %v578
    %580 = vdwg.mxu0
    %581 = vmatprep.subr.mxu0 %v260
    %582 = vmatpush1.msra.mxu0 %v259
    %583 = vmatprep.subr.mxu0 %v256
    %584 = vmatpush1.msra.mxu0 %v255
    %585 = vmatprep.subr.mxu0 %v252
    %586 = vmatpush1.msra.mxu0 %v251
    %587 = vmatprep.subr.mxu0 %v248
    %588 = vmatpush1.msra.mxu0 %v247
    %589 = vmatprep.subr.mxu0 %v244
    %590 = vmatpush1.msra.mxu0 %v243
    %591 = vmatprep.subr.mxu0 %v240
    %592 = vmatpush1.msra.mxu0 %v239
    %593 = vmatprep.subr.mxu0 %v236
    %594 = vmatpush1.msra.mxu0 %v235
    %595 = vmatprep.subr.mxu0 %v232
    %596 = vmatpush1.msra.mxu0 %v231
    %597 = vmatprep.subr.mxu0 %v228
    %598 = vmatpush1.msra.mxu0 %v227
    %599 = vmatprep.subr.mxu0 %v224
    %600 = vmatpush1.msra.mxu0 %v223
    %601 = vmatprep.subr.mxu0 %v220
    %602 = vmatpush1.msra.mxu0 %v219
    %603 = vmatprep.subr.mxu0 %v216
    %604 = vmatpush1.msra.mxu0 %v215
    %605 = vmatprep.subr.mxu0 %v212
    %606 = vmatpush1.msra.mxu0 %v211
    %607 = vmatprep.subr.mxu0 %v208
    %608 = vmatpush1.msra.mxu0 %v207
    %609 = vmatprep.subr.mxu0 %v204
    %610 = vmatpush1.msra.mxu0 %v203
    %611 = vmatprep.subr.mxu0 %v200
    %612 = vmatpush1.msra.mxu0 %v199
    %613 = vmatprep.subr.mxu0 %v324
    %614 = vmatpush2.msra.mxu0 %v323
    %615 = vmatprep.subr.mxu0 %v320
    %616 = vmatpush2.msra.mxu0 %v319
    %617 = vmatprep.subr.mxu0 %v316
    %618 = vmatpush2.msra.mxu0 %v315
    %619 = vmatprep.subr.mxu0 %v312
    %620 = vmatpush2.msra.mxu0 %v311
    %621 = vmatprep.subr.mxu0 %v308
    %622 = vmatpush2.msra.mxu0 %v307
    %623 = vmatprep.subr.mxu0 %v304
    %624 = vmatpush2.msra.mxu0 %v303
    %625 = vmatprep.subr.mxu0 %v300
    %626 = vmatpush2.msra.mxu0 %v299
    %627 = vmatprep.subr.mxu0 %v296
    %628 = vmatpush2.msra.mxu0 %v295
    %629 = vmatprep.subr.mxu0 %v292
    %630 = vmatpush2.msra.mxu0 %v291
    %631 = vmatprep.subr.mxu0 %v288
    %632 = vmatpush2.msra.mxu0 %v287
    %633 = vmatprep.subr.mxu0 %v284
    %634 = vmatpush2.msra.mxu0 %v283
    %635 = vmatprep.subr.mxu0 %v280
    %636 = vmatpush2.msra.mxu0 %v279
    %637 = vmatprep.subr.mxu0 %v276
    %638 = vmatpush2.msra.mxu0 %v275
    %639 = vmatprep.subr.mxu0 %v272
    %640 = vmatpush2.msra.mxu0 %v271
    %641 = vmatprep.subr.mxu0 %v268
    %642 = vmatpush2.msra.mxu0 %v267
    %643 = vmatprep.subr.mxu0 %v264
    %644 = vmatpush2.msra.mxu0 %v263
    %645 = vmatprep.mubr.f32.mxu0 %v495
    %646 = vmatmul.mubr.f32.gmra.mxu0 %v493
    %v647 = vpop.f32.mrf.mxu0
    %v648 = vadd.f32 %v577, %v647
    %v649 = vpop.f32.mrf.mxu0
    %v650 = vadd.f32 %v579, %v649
    %651 = vdwg.mxu0
    %652 = vmatprep.subr.mxu0 %v388
    %653 = vmatpush1.msra.mxu0 %v387
    %654 = vmatprep.subr.mxu0 %v384
    %655 = vmatpush1.msra.mxu0 %v383
    %656 = vmatprep.subr.mxu0 %v380
    %657 = vmatpush1.msra.mxu0 %v379
    %658 = vmatprep.subr.mxu0 %v376
    %659 = vmatpush1.msra.mxu0 %v375
    %660 = vmatprep.subr.mxu0 %v372
    %661 = vmatpush1.msra.mxu0 %v371
    %662 = vmatprep.subr.mxu0 %v368
    %663 = vmatpush1.msra.mxu0 %v367
    %664 = vmatprep.subr.mxu0 %v364
    %665 = vmatpush1.msra.mxu0 %v363
    %666 = vmatprep.subr.mxu0 %v360
    %667 = vmatpush1.msra.mxu0 %v359
    %668 = vmatprep.subr.mxu0 %v356
    %669 = vmatpush1.msra.mxu0 %v355
    %670 = vmatprep.subr.mxu0 %v352
    %671 = vmatpush1.msra.mxu0 %v351
    %672 = vmatprep.subr.mxu0 %v348
    %673 = vmatpush1.msra.mxu0 %v347
    %674 = vmatprep.subr.mxu0 %v344
    %675 = vmatpush1.msra.mxu0 %v343
    %676 = vmatprep.subr.mxu0 %v340
    %677 = vmatpush1.msra.mxu0 %v339
    %678 = vmatprep.subr.mxu0 %v336
    %679 = vmatpush1.msra.mxu0 %v335
    %680 = vmatprep.subr.mxu0 %v332
    %681 = vmatpush1.msra.mxu0 %v331
    %682 = vmatprep.subr.mxu0 %v328
    %683 = vmatpush1.msra.mxu0 %v327
    %684 = vmatprep.subr.mxu0 %v452
    %685 = vmatpush2.msra.mxu0 %v451
    %686 = vmatprep.subr.mxu0 %v448
    %687 = vmatpush2.msra.mxu0 %v447
    %688 = vmatprep.subr.mxu0 %v444
    %689 = vmatpush2.msra.mxu0 %v443
    %690 = vmatprep.subr.mxu0 %v440
    %691 = vmatpush2.msra.mxu0 %v439
    %692 = vmatprep.subr.mxu0 %v436
    %693 = vmatpush2.msra.mxu0 %v435
    %694 = vmatprep.subr.mxu0 %v432
    %695 = vmatpush2.msra.mxu0 %v431
    %696 = vmatprep.subr.mxu0 %v428
    %697 = vmatpush2.msra.mxu0 %v427
    %698 = vmatprep.subr.mxu0 %v424
    %699 = vmatpush2.msra.mxu0 %v423
    %700 = vmatprep.subr.mxu0 %v420
    %701 = vmatpush2.msra.mxu0 %v419
    %702 = vmatprep.subr.mxu0 %v416
    %703 = vmatpush2.msra.mxu0 %v415
    %704 = vmatprep.subr.mxu0 %v412
    %705 = vmatpush2.msra.mxu0 %v411
    %706 = vmatprep.subr.mxu0 %v408
    %707 = vmatpush2.msra.mxu0 %v407
    %708 = vmatprep.subr.mxu0 %v404
    %709 = vmatpush2.msra.mxu0 %v403
    %710 = vmatprep.subr.mxu0 %v400
    %711 = vmatpush2.msra.mxu0 %v399
    %712 = vmatprep.subr.mxu0 %v396
    %713 = vmatpush2.msra.mxu0 %v395
    %714 = vmatprep.subr.mxu0 %v392
    %715 = vmatpush2.msra.mxu0 %v391
    %716 = vmatprep.mubr.f32.mxu0 %v503
    %717 = vmatmul.mubr.f32.gmra.mxu0 %v502
    %v718 = vpop.f32.mrf.mxu0
    %v719 = vadd.f32 %v648, %v718
    %v720 = vpop.f32.mrf.mxu0
    %v721 = vadd.f32 %v650, %v720
    %722 = vdwg.mxu0
    %723 = vmatprep.subr.mxu0 %v134
    %724 = vmatpush1.msra.mxu0 %v133
    %725 = vmatprep.subr.mxu0 %v130
    %726 = vmatpush1.msra.mxu0 %v129
    %727 = vmatprep.subr.mxu0 %v126
    %728 = vmatpush1.msra.mxu0 %v125
    %729 = vmatprep.subr.mxu0 %v122
    %730 = vmatpush1.msra.mxu0 %v121
    %731 = vmatprep.subr.mxu0 %v118
    %732 = vmatpush1.msra.mxu0 %v117
    %733 = vmatprep.subr.mxu0 %v114
    %734 = vmatpush1.msra.mxu0 %v113
    %735 = vmatprep.subr.mxu0 %v110
    %736 = vmatpush1.msra.mxu0 %v109
    %737 = vmatprep.subr.mxu0 %v106
    %738 = vmatpush1.msra.mxu0 %v105
    %739 = vmatprep.subr.mxu0 %v102
    %740 = vmatpush1.msra.mxu0 %v101
    %741 = vmatprep.subr.mxu0 %v98
    %742 = vmatpush1.msra.mxu0 %v97
    %743 = vmatprep.subr.mxu0 %v94
    %744 = vmatpush1.msra.mxu0 %v93
    %745 = vmatprep.subr.mxu0 %v90
    %746 = vmatpush1.msra.mxu0 %v89
    %747 = vmatprep.subr.mxu0 %v86
    %748 = vmatpush1.msra.mxu0 %v85
    %749 = vmatprep.subr.mxu0 %v82
    %750 = vmatpush1.msra.mxu0 %v81
    %751 = vmatprep.subr.mxu0 %v78
    %752 = vmatpush1.msra.mxu0 %v77
    %753 = vmatprep.subr.mxu0 %v74
    %754 = vmatpush1.msra.mxu0 %v73
    %755 = vmatprep.subr.mxu0 %v198
    %756 = vmatpush2.msra.mxu0 %v197
    %757 = vmatprep.subr.mxu0 %v194
    %758 = vmatpush2.msra.mxu0 %v193
    %759 = vmatprep.subr.mxu0 %v190
    %760 = vmatpush2.msra.mxu0 %v189
    %761 = vmatprep.subr.mxu0 %v186
    %762 = vmatpush2.msra.mxu0 %v185
    %763 = vmatprep.subr.mxu0 %v182
    %764 = vmatpush2.msra.mxu0 %v181
    %765 = vmatprep.subr.mxu0 %v178
    %766 = vmatpush2.msra.mxu0 %v177
    %767 = vmatprep.subr.mxu0 %v174
    %768 = vmatpush2.msra.mxu0 %v173
    %769 = vmatprep.subr.mxu0 %v170
    %770 = vmatpush2.msra.mxu0 %v169
    %771 = vmatprep.subr.mxu0 %v166
    %772 = vmatpush2.msra.mxu0 %v165
    %773 = vmatprep.subr.mxu0 %v162
    %774 = vmatpush2.msra.mxu0 %v161
    %775 = vmatprep.subr.mxu0 %v158
    %776 = vmatpush2.msra.mxu0 %v157
    %777 = vmatprep.subr.mxu0 %v154
    %778 = vmatpush2.msra.mxu0 %v153
    %779 = vmatprep.subr.mxu0 %v150
    %780 = vmatpush2.msra.mxu0 %v149
    %781 = vmatprep.subr.mxu0 %v146
    %782 = vmatpush2.msra.mxu0 %v145
    %783 = vmatprep.subr.mxu0 %v142
    %784 = vmatpush2.msra.mxu0 %v141
    %785 = vmatprep.subr.mxu0 %v138
    %786 = vmatpush2.msra.mxu0 %v137
    %787 = vmatprep.mubr.f32.mxu0 %v494
    %788 = vmatmul.mubr.f32.gmra.mxu0 %v486
    %v789 = vpop.f32.mrf.mxu0
    %v790 = vadd.f32 %v468, %v789
    %v791 = vpop.f32.mrf.mxu0
    %v792 = vadd.f32 %v472, %v791
    %793 = vdwg.mxu0
    %794 = vmatprep.subr.mxu0 %v262
    %795 = vmatpush1.msra.mxu0 %v261
    %796 = vmatprep.subr.mxu0 %v258
    %797 = vmatpush1.msra.mxu0 %v257
    %798 = vmatprep.subr.mxu0 %v254
    %799 = vmatpush1.msra.mxu0 %v253
    %800 = vmatprep.subr.mxu0 %v250
    %801 = vmatpush1.msra.mxu0 %v249
    %802 = vmatprep.subr.mxu0 %v246
    %803 = vmatpush1.msra.mxu0 %v245
    %804 = vmatprep.subr.mxu0 %v242
    %805 = vmatpush1.msra.mxu0 %v241
    %806 = vmatprep.subr.mxu0 %v238
    %807 = vmatpush1.msra.mxu0 %v237
    %808 = vmatprep.subr.mxu0 %v234
    %809 = vmatpush1.msra.mxu0 %v233
    %810 = vmatprep.subr.mxu0 %v230
    %811 = vmatpush1.msra.mxu0 %v229
    %812 = vmatprep.subr.mxu0 %v226
    %813 = vmatpush1.msra.mxu0 %v225
    %814 = vmatprep.subr.mxu0 %v222
    %815 = vmatpush1.msra.mxu0 %v221
    %816 = vmatprep.subr.mxu0 %v218
    %817 = vmatpush1.msra.mxu0 %v217
    %818 = vmatprep.subr.mxu0 %v214
    %819 = vmatpush1.msra.mxu0 %v213
    %820 = vmatprep.subr.mxu0 %v210
    %821 = vmatpush1.msra.mxu0 %v209
    %822 = vmatprep.subr.mxu0 %v206
    %823 = vmatpush1.msra.mxu0 %v205
    %824 = vmatprep.subr.mxu0 %v202
    %825 = vmatpush1.msra.mxu0 %v201
    %826 = vmatprep.subr.mxu0 %v326
    %827 = vmatpush2.msra.mxu0 %v325
    %828 = vmatprep.subr.mxu0 %v322
    %829 = vmatpush2.msra.mxu0 %v321
    %830 = vmatprep.subr.mxu0 %v318
    %831 = vmatpush2.msra.mxu0 %v317
    %832 = vmatprep.subr.mxu0 %v314
    %833 = vmatpush2.msra.mxu0 %v313
    %834 = vmatprep.subr.mxu0 %v310
    %835 = vmatpush2.msra.mxu0 %v309
    %836 = vmatprep.subr.mxu0 %v306
    %837 = vmatpush2.msra.mxu0 %v305
    %838 = vmatprep.subr.mxu0 %v302
    %839 = vmatpush2.msra.mxu0 %v301
    %840 = vmatprep.subr.mxu0 %v298
    %841 = vmatpush2.msra.mxu0 %v297
    %842 = vmatprep.subr.mxu0 %v294
    %843 = vmatpush2.msra.mxu0 %v293
    %844 = vmatprep.subr.mxu0 %v290
    %845 = vmatpush2.msra.mxu0 %v289
    %846 = vmatprep.subr.mxu0 %v286
    %847 = vmatpush2.msra.mxu0 %v285
    %848 = vmatprep.subr.mxu0 %v282
    %849 = vmatpush2.msra.mxu0 %v281
    %850 = vmatprep.subr.mxu0 %v278
    %851 = vmatpush2.msra.mxu0 %v277
    %852 = vmatprep.subr.mxu0 %v274
    %853 = vmatpush2.msra.mxu0 %v273
    %854 = vmatprep.subr.mxu0 %v270
    %855 = vmatpush2.msra.mxu0 %v269
    %856 = vmatprep.subr.mxu0 %v266
    %857 = vmatpush2.msra.mxu0 %v265
    %858 = vmatprep.mubr.f32.mxu0 %v495
    %859 = vmatmul.mubr.f32.gmra.mxu0 %v493
    %v860 = vpop.f32.mrf.mxu0
    %v861 = vadd.f32 %v790, %v860
    %v862 = vpop.f32.mrf.mxu0
    %v863 = vadd.f32 %v792, %v862
    %864 = vdwg.mxu0
    %865 = vmatprep.subr.mxu0 %v390
    %866 = vmatpush1.msra.mxu0 %v389
    %867 = vmatprep.subr.mxu0 %v386
    %868 = vmatpush1.msra.mxu0 %v385
    %869 = vmatprep.subr.mxu0 %v382
    %870 = vmatpush1.msra.mxu0 %v381
    %871 = vmatprep.subr.mxu0 %v378
    %872 = vmatpush1.msra.mxu0 %v377
    %873 = vmatprep.subr.mxu0 %v374
    %874 = vmatpush1.msra.mxu0 %v373
    %875 = vmatprep.subr.mxu0 %v370
    %876 = vmatpush1.msra.mxu0 %v369
    %877 = vmatprep.subr.mxu0 %v366
    %878 = vmatpush1.msra.mxu0 %v365
    %879 = vmatprep.subr.mxu0 %v362
    %880 = vmatpush1.msra.mxu0 %v361
    %881 = vmatprep.subr.mxu0 %v358
    %882 = vmatpush1.msra.mxu0 %v357
    %883 = vmatprep.subr.mxu0 %v354
    %884 = vmatpush1.msra.mxu0 %v353
    %885 = vmatprep.subr.mxu0 %v350
    %886 = vmatpush1.msra.mxu0 %v349
    %887 = vmatprep.subr.mxu0 %v346
    %888 = vmatpush1.msra.mxu0 %v345
    %889 = vmatprep.subr.mxu0 %v342
    %890 = vmatpush1.msra.mxu0 %v341
    %891 = vmatprep.subr.mxu0 %v338
    %892 = vmatpush1.msra.mxu0 %v337
    %893 = vmatprep.subr.mxu0 %v334
    %894 = vmatpush1.msra.mxu0 %v333
    %895 = vmatprep.subr.mxu0 %v330
    %896 = vmatpush1.msra.mxu0 %v329
    %897 = vmatprep.subr.mxu0 %v454
    %898 = vmatpush2.msra.mxu0 %v453
    %899 = vmatprep.subr.mxu0 %v450
    %900 = vmatpush2.msra.mxu0 %v449
    %901 = vmatprep.subr.mxu0 %v446
    %902 = vmatpush2.msra.mxu0 %v445
    %903 = vmatprep.subr.mxu0 %v442
    %904 = vmatpush2.msra.mxu0 %v441
    %905 = vmatprep.subr.mxu0 %v438
    %906 = vmatpush2.msra.mxu0 %v437
    %907 = vmatprep.subr.mxu0 %v434
    %908 = vmatpush2.msra.mxu0 %v433
    %909 = vmatprep.subr.mxu0 %v430
    %910 = vmatpush2.msra.mxu0 %v429
    %911 = vmatprep.subr.mxu0 %v426
    %912 = vmatpush2.msra.mxu0 %v425
    %913 = vmatprep.subr.mxu0 %v422
    %914 = vmatpush2.msra.mxu0 %v421
    %915 = vmatprep.subr.mxu0 %v418
    %916 = vmatpush2.msra.mxu0 %v417
    %917 = vmatprep.subr.mxu0 %v414
    %918 = vmatpush2.msra.mxu0 %v413
    %919 = vmatprep.subr.mxu0 %v410
    %920 = vmatpush2.msra.mxu0 %v409
    %921 = vmatprep.subr.mxu0 %v406
    %922 = vmatpush2.msra.mxu0 %v405
    %923 = vmatprep.subr.mxu0 %v402
    %924 = vmatpush2.msra.mxu0 %v401
    %925 = vmatprep.subr.mxu0 %v398
    %926 = vmatpush2.msra.mxu0 %v397
    %927 = vmatprep.subr.mxu0 %v394
    %928 = vmatpush2.msra.mxu0 %v393
    %929 = vmatprep.mubr.f32.mxu0 %v503
    %930 = vmatmul.mubr.f32.gmra.mxu0 %v502
    %v931 = vpop.f32.mrf.mxu0
    %v932 = vadd.f32 %v861, %v931
    %v933 = vpop.f32.mrf.mxu0
    %v934 = vadd.f32 %v863, %v933
    %935 = vdwg.mxu0
    %v936 = vld [vmem:[%s3] sm:$0xff]
    %v937 = vld [vmem:[%s3 + $0x8] sm:$0xff]
    %v938 = vld [vmem:[%s3 + $0x10] sm:$0xff]
    %v939 = vld [vmem:[%s3 + $0x18] sm:$0xff]
    %v940 = vld [vmem:[%s3 + $0x20] sm:$0xff]
    %v941 = vld [vmem:[%s3 + $0x28] sm:$0xff]
    %v942 = vld [vmem:[%s3 + $0x30] sm:$0xff]
    %v943 = vld [vmem:[%s3 + $0x38] sm:$0xff]
    %v944 = vld [vmem:[%s3 + $0x40] sm:$0xff]
    %v945 = vld [vmem:[%s3 + $0x48] sm:$0xff]
    %v946 = vld [vmem:[%s3 + $0x50] sm:$0xff]
    %v947 = vld [vmem:[%s3 + $0x58] sm:$0xff]
    %v948 = vld [vmem:[%s3 + $0x60] sm:$0xff]
    %v949 = vld [vmem:[%s3 + $0x68] sm:$0xff]
    %v950 = vld [vmem:[%s3 + $0x70] sm:$0xff]
    %v951 = vld [vmem:[%s3 + $0x78] sm:$0xff]
    %v952 = vld [vmem:[%s3 + $0x80] sm:$0xff]
    %v953 = vld [vmem:[%s3 + $0x88] sm:$0xff]
    %v954 = vld [vmem:[%s3 + $0x90] sm:$0xff]
    %v955 = vld [vmem:[%s3 + $0x98] sm:$0xff]
    %v956 = vld [vmem:[%s3 + $0xa0] sm:$0xff]
    %v957 = vld [vmem:[%s3 + $0xa8] sm:$0xff]
    %v958 = vld [vmem:[%s3 + $0xb0] sm:$0xff]
    %v959 = vld [vmem:[%s3 + $0xb8] sm:$0xff]
    %v960 = vld [vmem:[%s3 + $0xc0] sm:$0xff]
    %v961 = vld [vmem:[%s3 + $0xc8] sm:$0xff]
    %v962 = vld [vmem:[%s3 + $0xd0] sm:$0xff]
    %v963 = vld [vmem:[%s3 + $0xd8] sm:$0xff]
    %v964 = vld [vmem:[%s3 + $0xe0] sm:$0xff]
    %v965 = vld [vmem:[%s3 + $0xe8] sm:$0xff]
    %v966 = vld [vmem:[%s3 + $0xf0] sm:$0xff]
    %v967 = vld [vmem:[%s3 + $0xf8] sm:$0xff]
    %v968 = vld [vmem:[%s3 + $0x100] sm:$0xff]
    %v969 = vld [vmem:[%s3 + $0x108] sm:$0xff]
    %v970 = vld [vmem:[%s3 + $0x110] sm:$0xff]
    %v971 = vld [vmem:[%s3 + $0x118] sm:$0xff]
    %v972 = vld [vmem:[%s3 + $0x120] sm:$0xff]
    %v973 = vld [vmem:[%s3 + $0x128] sm:$0xff]
    %v974 = vld [vmem:[%s3 + $0x130] sm:$0xff]
    %v975 = vld [vmem:[%s3 + $0x138] sm:$0xff]
    %v976 = vld [vmem:[%s3 + $0x140] sm:$0xff]
    %v977 = vld [vmem:[%s3 + $0x148] sm:$0xff]
    %v978 = vld [vmem:[%s3 + $0x150] sm:$0xff]
    %v979 = vld [vmem:[%s3 + $0x158] sm:$0xff]
    %v980 = vld [vmem:[%s3 + $0x160] sm:$0xff]
    %v981 = vld [vmem:[%s3 + $0x168] sm:$0xff]
    %v982 = vld [vmem:[%s3 + $0x170] sm:$0xff]
    %v983 = vld [vmem:[%s3 + $0x178] sm:$0xff]
    %v984 = vld [vmem:[%s3 + $0x180] sm:$0xff]
    %v985 = vld [vmem:[%s3 + $0x188] sm:$0xff]
    %v986 = vld [vmem:[%s3 + $0x190] sm:$0xff]
    %v987 = vld [vmem:[%s3 + $0x198] sm:$0xff]
    %v988 = vld [vmem:[%s3 + $0x1a0] sm:$0xff]
    %v989 = vld [vmem:[%s3 + $0x1a8] sm:$0xff]
    %v990 = vld [vmem:[%s3 + $0x1b0] sm:$0xff]
    %v991 = vld [vmem:[%s3 + $0x1b8] sm:$0xff]
    %v992 = vld [vmem:[%s3 + $0x1c0] sm:$0xff]
    %v993 = vld [vmem:[%s3 + $0x1c8] sm:$0xff]
    %v994 = vld [vmem:[%s3 + $0x1d0] sm:$0xff]
    %v995 = vld [vmem:[%s3 + $0x1d8] sm:$0xff]
    %v996 = vld [vmem:[%s3 + $0x1e0] sm:$0xff]
    %v997 = vld [vmem:[%s3 + $0x1e8] sm:$0xff]
    %v998 = vld [vmem:[%s3 + $0x1f0] sm:$0xff]
    %v999 = vld [vmem:[%s3 + $0x1f8] sm:$0xff]
    %p1000 = scmp.eq.s32.totalorder 0, 0
    // Predicated region
    $region46: #{rnn_model_forward.1} parent=1 // pred_check
      %p1001 = pneg %p1000
    $region47: #{rnn_model_forward.1} parent=1 // pred_check_branch
      %1003 = sbr.rel (%p1001) target = $region49
    $region48: #{rnn_model_forward.1} parent=1 // pred_region
      %s1004 = sld [smem:[#allocation3]]
      %s1005 = sld [smem:[#allocation4]]
      %v1006 = vstv %s1005
      %1007 = vmatprep.subr.mxu0 0.0
      %1008 = vmatpush1.msra.mxu0 %v951
      %1009 = vmatprep.subr.mxu0 0.0
      %1010 = vmatpush1.msra.mxu0 %v950
      %1011 = vmatprep.subr.mxu0 0.0
      %1012 = vmatpush1.msra.mxu0 %v949
      %1013 = vmatprep.subr.mxu0 0.0
      %1014 = vmatpush1.msra.mxu0 %v948
      %1015 = vmatprep.subr.mxu0 0.0
      %1016 = vmatpush1.msra.mxu0 %v947
      %1017 = vmatprep.subr.mxu0 0.0
      %1018 = vmatpush1.msra.mxu0 %v946
      %1019 = vmatprep.subr.mxu0 0.0
      %1020 = vmatpush1.msra.mxu0 %v945
      %1021 = vmatprep.subr.mxu0 0.0
      %1022 = vmatpush1.msra.mxu0 %v944
      %1023 = vmatprep.subr.mxu0 0.0
      %1024 = vmatpush1.msra.mxu0 %v943
      %1025 = vmatprep.subr.mxu0 0.0
      %1026 = vmatpush1.msra.mxu0 %v942
      %1027 = vmatprep.subr.mxu0 0.0
      %1028 = vmatpush1.msra.mxu0 %v941
      %1029 = vmatprep.subr.mxu0 0.0
      %1030 = vmatpush1.msra.mxu0 %v940
      %1031 = vmatprep.subr.mxu0 0.0
      %1032 = vmatpush1.msra.mxu0 %v939
      %1033 = vmatprep.subr.mxu0 0.0
      %1034 = vmatpush1.msra.mxu0 %v938
      %1035 = vmatprep.subr.mxu0 0.0
      %1036 = vmatpush1.msra.mxu0 %v937
      %1037 = vmatprep.subr.mxu0 0.0
      %1038 = vmatpush1.msra.mxu0 %v936
      %1039 = vmatprep.subr.mxu0 0.0
      %1040 = vmatpush2.msra.mxu0 %v967
      %1041 = vmatprep.subr.mxu0 0.0
      %1042 = vmatpush2.msra.mxu0 %v966
      %1043 = vmatprep.subr.mxu0 0.0
      %1044 = vmatpush2.msra.mxu0 %v965
      %1045 = vmatprep.subr.mxu0 0.0
      %1046 = vmatpush2.msra.mxu0 %v964
      %1047 = vmatprep.subr.mxu0 0.0
      %1048 = vmatpush2.msra.mxu0 %v963
      %1049 = vmatprep.subr.mxu0 0.0
      %1050 = vmatpush2.msra.mxu0 %v962
      %1051 = vmatprep.subr.mxu0 0.0
      %1052 = vmatpush2.msra.mxu0 %v961
      %1053 = vmatprep.subr.mxu0 0.0
      %1054 = vmatpush2.msra.mxu0 %v960
      %1055 = vmatprep.subr.mxu0 0.0
      %1056 = vmatpush2.msra.mxu0 %v959
      %1057 = vmatprep.subr.mxu0 0.0
      %1058 = vmatpush2.msra.mxu0 %v958
      %1059 = vmatprep.subr.mxu0 0.0
      %1060 = vmatpush2.msra.mxu0 %v957
      %1061 = vmatprep.subr.mxu0 0.0
      %1062 = vmatpush2.msra.mxu0 %v956
      %1063 = vmatprep.subr.mxu0 0.0
      %1064 = vmatpush2.msra.mxu0 %v955
      %1065 = vmatprep.subr.mxu0 0.0
      %1066 = vmatpush2.msra.mxu0 %v954
      %1067 = vmatprep.subr.mxu0 0.0
      %1068 = vmatpush2.msra.mxu0 %v953
      %1069 = vmatprep.subr.mxu0 0.0
      %1070 = vmatpush2.msra.mxu0 %v952
      %1071 = vmatprep.mubr.f32.mxu0 %v721
      %1072 = vmatmul.mubr.f32.gmra.mxu0 %v719
      %v1073 = vpop.f32.mrf.mxu0
      %v1074 = vadd.f32 %v1006, %v1073
      %v1075 = vpop.f32.mrf.mxu0
      %1076 = vdwg.mxu0
      %1077 = vmatprep.subr.mxu0 0.0
      %1078 = vmatpush1.msra.mxu0 %v983
      %1079 = vmatprep.subr.mxu0 0.0
      %1080 = vmatpush1.msra.mxu0 %v982
      %1081 = vmatprep.subr.mxu0 0.0
      %1082 = vmatpush1.msra.mxu0 %v981
      %1083 = vmatprep.subr.mxu0 0.0
      %1084 = vmatpush1.msra.mxu0 %v980
      %1085 = vmatprep.subr.mxu0 0.0
      %1086 = vmatpush1.msra.mxu0 %v979
      %1087 = vmatprep.subr.mxu0 0.0
      %1088 = vmatpush1.msra.mxu0 %v978
      %1089 = vmatprep.subr.mxu0 0.0
      %1090 = vmatpush1.msra.mxu0 %v977
      %1091 = vmatprep.subr.mxu0 0.0
      %1092 = vmatpush1.msra.mxu0 %v976
      %1093 = vmatprep.subr.mxu0 0.0
      %1094 = vmatpush1.msra.mxu0 %v975
      %1095 = vmatprep.subr.mxu0 0.0
      %1096 = vmatpush1.msra.mxu0 %v974
      %1097 = vmatprep.subr.mxu0 0.0
      %1098 = vmatpush1.msra.mxu0 %v973
      %1099 = vmatprep.subr.mxu0 0.0
      %1100 = vmatpush1.msra.mxu0 %v972
      %1101 = vmatprep.subr.mxu0 0.0
      %1102 = vmatpush1.msra.mxu0 %v971
      %1103 = vmatprep.subr.mxu0 0.0
      %1104 = vmatpush1.msra.mxu0 %v970
      %1105 = vmatprep.subr.mxu0 0.0
      %1106 = vmatpush1.msra.mxu0 %v969
      %1107 = vmatprep.subr.mxu0 0.0
      %1108 = vmatpush1.msra.mxu0 %v968
      %1109 = vmatprep.subr.mxu0 0.0
      %1110 = vmatpush2.msra.mxu0 %v999
      %1111 = vmatprep.subr.mxu0 0.0
      %1112 = vmatpush2.msra.mxu0 %v998
      %1113 = vmatprep.subr.mxu0 0.0
      %1114 = vmatpush2.msra.mxu0 %v997
      %1115 = vmatprep.subr.mxu0 0.0
      %1116 = vmatpush2.msra.mxu0 %v996
      %1117 = vmatprep.subr.mxu0 0.0
      %1118 = vmatpush2.msra.mxu0 %v995
      %1119 = vmatprep.subr.mxu0 0.0
      %1120 = vmatpush2.msra.mxu0 %v994
      %1121 = vmatprep.subr.mxu0 0.0
      %1122 = vmatpush2.msra.mxu0 %v993
      %1123 = vmatprep.subr.mxu0 0.0
      %1124 = vmatpush2.msra.mxu0 %v992
      %1125 = vmatprep.subr.mxu0 0.0
      %1126 = vmatpush2.msra.mxu0 %v991
      %1127 = vmatprep.subr.mxu0 0.0
      %1128 = vmatpush2.msra.mxu0 %v990
      %1129 = vmatprep.subr.mxu0 0.0
      %1130 = vmatpush2.msra.mxu0 %v989
      %1131 = vmatprep.subr.mxu0 0.0
      %1132 = vmatpush2.msra.mxu0 %v988
      %1133 = vmatprep.subr.mxu0 0.0
      %1134 = vmatpush2.msra.mxu0 %v987
      %1135 = vmatprep.subr.mxu0 0.0
      %1136 = vmatpush2.msra.mxu0 %v986
      %1137 = vmatprep.subr.mxu0 0.0
      %1138 = vmatpush2.msra.mxu0 %v985
      %1139 = vmatprep.subr.mxu0 0.0
      %1140 = vmatpush2.msra.mxu0 %v984
      %1141 = vmatprep.mubr.f32.mxu0 %v934
      %1142 = vmatmul.mubr.f32.gmra.mxu0 %v932
      %v1143 = vpop.f32.mrf.mxu0
      %v1144 = vadd.f32 %v1074, %v1143
      %v1145 = vpop.f32.mrf.mxu0
      %1146 = vdwg.mxu0
      %v1147 = vstv %s1004
      %v1148 = vmul.f32 %v1147, 0.0
      %v1149 = vadd.f32 %v1144, %v1148
      %v1150 = vtanh.pop %v1149
      %v1151 = vmul.f32 %v1147, %v1150
      %1153 = vrot.lane.b32.xlu0 %v1151, 2
      %v1154 = vpop.permute.xlu0 %1153
      %v1156 = vadd.f32 %v1144, %v1154
      %v1157 = vtanh.pop %v1156
      %v1158 = vmul.f32 %v1147, %v1157
      %1160 = vrot.lane.b32.xlu0 %v1158, 2
      %v1161 = vpop.permute.xlu0 %1160
      %v1163 = vadd.f32 %v1144, %v1161
      %v1164 = vtanh.pop %v1163
      %v1165 = vmul.f32 %v1147, %v1164
      %1167 = vrot.lane.b32.xlu0 %v1165, 2
      %v1168 = vpop.permute.xlu0 %1167
      %v1170 = vadd.f32 %v1144, %v1168
      %v1171 = vtanh.pop %v1170
      %v1172 = vmul.f32 %v1147, %v1171
      %v1174 = vrot.slane %v1172, 7
      %1175 = vrot.lane.b32.xlu0 %v1174, 122
      %v1176 = vpop.permute.xlu0 %1175
      %v1178 = vadd.f32 %v1144, %v1176
      %v1179 = vtanh.pop %v1178
      %v1180 = vmul.f32 %v1147, %v1179
      %1182 = vrot.lane.b32.xlu0 %v1180, 2
      %v1183 = vpop.permute.xlu0 %1182
      %v1185 = vadd.f32 %v1144, %v1183
      %v1186 = vtanh.pop %v1185
      %v1187 = vmul.f32 %v1147, %v1186
      %1189 = vrot.lane.b32.xlu0 %v1187, 2
      %v1190 = vpop.permute.xlu0 %1189
      %v1192 = vadd.f32 %v1144, %v1190
      %v1193 = vtanh.pop %v1192
      %v1194 = vmul.f32 %v1147, %v1193
      %1196 = vrot.lane.b32.xlu0 %v1194, 2
      %v1197 = vpop.permute.xlu0 %1196
      %v1199 = vadd.f32 %v1144, %v1197
      %v1200 = vtanh.pop %v1199
      %vm1201 = vcmask 15360
      %v1202 = vsel %vm1201, %v1150, %v1157
      %vm1203 = vcmask 31744
      %v1204 = vsel %vm1203, %v1202, %v1164
      %vm1205 = vcmask 48128
      %v1206 = vsel %vm1205, %v1204, %v1171
      %v1207 = vsel %vm1201, %v1179, %v1186
      %v1208 = vsel %vm1203, %v1207, %v1193
      %v1209 = vsel %vm1205, %v1208, %v1200
      %vm1210 = vcmask 1040384
      %v1211 = vsel %vm1210, %v1206, %v1209
      %v1212 = vld [vmem:[%s6] sm:$0xff]
      %v1213 = vld [vmem:[#allocation10] sm:$0x1]
      %v1215 = vlaneseq
      %v1216 = vshrl.u32 %v1215, 7
      %v1217 = vsub.s32 0, %v1216
      %v1218 = vrot.slane %v1213, %v1217
      %vm1220 = vcmask 64512
      %v1222 = vsel %vm1220, %v1211, 0
      %1224 = vmatprep.subr.mxu0 0.0
      %1225 = vmatpush1.msra.mxu0 0.0
      %1226 = vmatprep.subr.mxu0 0.0
      %1227 = vmatpush1.msra.mxu0 0.0
      %1228 = vmatprep.subr.mxu0 0.0
      %1229 = vmatpush1.msra.mxu0 0.0
      %1230 = vmatprep.subr.mxu0 0.0
      %1231 = vmatpush1.msra.mxu0 0.0
      %1232 = vmatprep.subr.mxu0 0.0
      %1233 = vmatpush1.msra.mxu0 0.0
      %1234 = vmatprep.subr.mxu0 0.0
      %1235 = vmatpush1.msra.mxu0 0.0
      %1236 = vmatprep.subr.mxu0 0.0
      %1237 = vmatpush1.msra.mxu0 0.0
      %1238 = vmatprep.subr.mxu0 0.0
      %1239 = vmatpush1.msra.mxu0 0.0
      %1240 = vmatprep.subr.mxu0 0.0
      %1241 = vmatpush1.msra.mxu0 0.0
      %1242 = vmatprep.subr.mxu0 0.0
      %1243 = vmatpush1.msra.mxu0 0.0
      %1244 = vmatprep.subr.mxu0 0.0
      %1245 = vmatpush1.msra.mxu0 0.0
      %1246 = vmatprep.subr.mxu0 0.0
      %1247 = vmatpush1.msra.mxu0 0.0
      %1248 = vmatprep.subr.mxu0 0.0
      %1249 = vmatpush1.msra.mxu0 0.0
      %1250 = vmatprep.subr.mxu0 0.0
      %1251 = vmatpush1.msra.mxu0 0.0
      %1252 = vmatprep.subr.mxu0 0.0
      %1253 = vmatpush1.msra.mxu0 0.0
      %1254 = vmatprep.subr.mxu0 0.0
      %1255 = vmatpush1.msra.mxu0 %v1212
      %1256 = vmatprep.subr.mxu0 0.0
      %1257 = vmatpush2.msra.mxu0 0.0
      %1258 = vmatprep.subr.mxu0 0.0
      %1259 = vmatpush2.msra.mxu0 0.0
      %1260 = vmatprep.subr.mxu0 0.0
      %1261 = vmatpush2.msra.mxu0 0.0
      %1262 = vmatprep.subr.mxu0 0.0
      %1263 = vmatpush2.msra.mxu0 0.0
      %1264 = vmatprep.subr.mxu0 0.0
      %1265 = vmatpush2.msra.mxu0 0.0
      %1266 = vmatprep.subr.mxu0 0.0
      %1267 = vmatpush2.msra.mxu0 0.0
      %1268 = vmatprep.subr.mxu0 0.0
      %1269 = vmatpush2.msra.mxu0 0.0
      %1270 = vmatprep.subr.mxu0 0.0
      %1271 = vmatpush2.msra.mxu0 0.0
      %1272 = vmatprep.subr.mxu0 0.0
      %1273 = vmatpush2.msra.mxu0 0.0
      %1274 = vmatprep.subr.mxu0 0.0
      %1275 = vmatpush2.msra.mxu0 0.0
      %1276 = vmatprep.subr.mxu0 0.0
      %1277 = vmatpush2.msra.mxu0 0.0
      %1278 = vmatprep.subr.mxu0 0.0
      %1279 = vmatpush2.msra.mxu0 0.0
      %1280 = vmatprep.subr.mxu0 0.0
      %1281 = vmatpush2.msra.mxu0 0.0
      %1282 = vmatprep.subr.mxu0 0.0
      %1283 = vmatpush2.msra.mxu0 0.0
      %1284 = vmatprep.subr.mxu0 0.0
      %1285 = vmatpush2.msra.mxu0 0.0
      %1286 = vmatprep.subr.mxu0 0.0
      %1287 = vmatpush2.msra.mxu0 0.0
      %1288 = vmatprep.mubr.f32.mxu0 0.0
      %1289 = vmatmul.mubr.f32.gmra.mxu0 %v1222
      %v1290 = vpop.f32.mrf.mxu0
      %v1291 = vadd.f32 %v1218, %v1290
      %v1292 = vpop.f32.mrf.mxu0
      %1293 = vdwg.mxu0
      %vm1294 = vcmask 9216
      %1295 = vst.msk [vmem:[#allocation11] sm:$0x3] %vm1294, %v1291
    $region49: #{rnn_model_forward.1} parent=1 // pred_fallthru
      _
    // Predicated region
    $region50: #{rnn_model_forward.1} parent=1 // pred_check
      _
    $region51: #{rnn_model_forward.1} parent=1 // pred_check_branch
      %1297 = sbr.rel (0) target = $region53
    $region52: #{rnn_model_forward.1} parent=1 // pred_region
      %s1299 = ssub.s32 32, 32
      %1300 = vsyncadd [#allocation7], %s1299
      %s1302 = sshll.u32 [#allocation11], 4
      %s1303 = int_to_ptr.vmem [resolvable:$true] %s1302
      %1305 = dma.vmem_to_hbm [thread:$0]  %s1303, 32, %s8, [#allocation7]
    $region53: #{rnn_model_forward.1} parent=1 // pred_fallthru
      _
    // Predicated region
    $region54: #{rnn_model_forward.1} parent=1 // pred_check
      _
    $region55: #{rnn_model_forward.1} parent=1 // pred_check_branch
      %1307 = sbr.rel (0) target = $region57
    $region56: #{rnn_model_forward.1} parent=1 // pred_region
      %1308 = dma.done [#allocation7], 32
    $region57: #{rnn_model_forward.1} parent=1 // pred_fallthru
      _
    %1309 = vsyncpa [#allocation6], 1
    %1310 = vsyncpa [#allocation9], 1
    %1311 = vsyncpa [#allocation7], 1

</llo_original>
